<compile_context>
chip_gen: v5e
topology: v5e:2x2
jax: 0.10.0
libtpu: 0.0.40
codegen_flags: <defaults>
</compile_context>

<pallas_src>
import functools

import jax
import jax.numpy as jnp
from jax.experimental import pallas as pl
from jax.experimental.pallas import tpu as pltpu


def _tg_supervisor_kernel(x_ref, w_ih0_ref, w_hh0_ref, w_cat_ref, b_ref,
                          fc_wt_ref, fc_b_ref, out_ref, *, T, B, H, L):
    """Full TGSupervisor forward in one kernel.

    x_ref     : (T*B, H)          time-major, batch-padded, flattened input
    w_ih0_ref : (H, 4H)           layer-0 input->hidden weight (i, f, o, g)
    w_hh0_ref : (H, 4H)           layer-0 hidden->hidden weight (i, f, o, g)
    w_cat_ref : (max(L-1,1), 2H, 4H)  layers 1..L-1, [w_ih; w_hh] K-concat
    b_ref     : (L, 1, 4H)        b_ih + b_hh (summed), gate order (i, f, o, g)
    fc_wt_ref : (H, H)            final linear weight, transposed (in, out)
    fc_b_ref  : (1, H)            final linear bias
    out_ref   : (T*B, H)          sigmoid(FC(LSTM(x)))
    """
    x = x_ref[...]                                     # (T*B, H), f32

    # Load all (tiny) weights once; reused across the unrolled recurrence.
    w_ih0 = w_ih0_ref[...]                             # (H, 4H)
    w_hh0 = w_hh0_ref[...]                             # (H, 4H)
    w_cat = [w_cat_ref[l] for l in range(L - 1)]       # each (2H, 4H)

    # Hoisted broadcasts: layer-0 bias is folded into xproj0; layers 1..L-1
    # biases are pre-broadcast to (B, 4H) exactly once (not per step).
    bias0 = b_ref[0]                                   # (1, 4H)
    bias_b = [jnp.broadcast_to(b_ref[l], (B, 4 * H)) for l in range(1, L)]

    # Hoisted layer-0 input projection (+ bias) over all timesteps at once:
    # one sublane-dense (T*B, H) @ (H, 4H) MXU pass instead of T tiny ones.
    xproj0 = (jnp.dot(x, w_ih0, preferred_element_type=jnp.float32)
              + bias0)                                 # (T*B, 4H)

    zeros = jnp.zeros((B, H), jnp.float32)
    h = [zeros for _ in range(L)]
    c = [zeros for _ in range(L)]
    top_h = [None] * T                                 # top-layer outputs, by t

    # Layer wavefront, fully unrolled (T, L static): at global step s, layer l
    # processes time t = s - l.  Within a step all active layers only read the
    # previous step's h/c, so their matmul + gate blocks are independent.
    for s in range(T + L - 1):
        active = [l for l in range(L) if 0 <= s - l < T]

        # --- 1) Gate pre-activations for every active layer (reads only
        #         previous-step h/c; one fused MXU dot per layer for l>0). ---
        gates_list = []
        for l in active:
            t = s - l
            if l == 0:
                g = (xproj0[t * B:(t + 1) * B, :]
                     + jnp.dot(h[0], w_hh0, preferred_element_type=jnp.float32))
            else:
                # K-concat fusion: [h_{l-1}(t), h_l(t-1)] @ [w_ih; w_hh].
                hin = jnp.concatenate([h[l - 1], h[l]], axis=1)   # (B, 2H)
                g = (jnp.dot(hin, w_cat[l - 1],
                             preferred_element_type=jnp.float32)
                     + bias_b[l - 1])
            gates_list.append(g)

        # --- 2) Batched nonlinearities across the active layers:
        #         one sigmoid over the contiguous (i,f,o) slab, one tanh
        #         over g -> 2 EUP launches for the whole step. ---
        if len(gates_list) > 1:
            stacked = jnp.concatenate(gates_list, axis=0)         # (nB, 4H)
        else:
            stacked = gates_list[0]
        sig = jax.nn.sigmoid(stacked[:, :3 * H])                  # (nB, 3H)
        g_all = jnp.tanh(stacked[:, 3 * H:])                      # (nB, H)

        # --- 3) Cell updates per layer, then ONE tanh(c_new) across layers. ---
        c_new_list = []
        for k, l in enumerate(active):
            i_g = sig[k * B:(k + 1) * B, 0 * H:1 * H]
            f_g = sig[k * B:(k + 1) * B, 1 * H:2 * H]
            g_g = g_all[k * B:(k + 1) * B, :]
            c_new_list.append(f_g * c[l] + i_g * g_g)
        if len(c_new_list) > 1:
            c_stack = jnp.concatenate(c_new_list, axis=0)         # (nB, H)
        else:
            c_stack = c_new_list[0]
        tanh_c = jnp.tanh(c_stack)                                # 3rd EUP launch

        for k, l in enumerate(active):
            o_g = sig[k * B:(k + 1) * B, 2 * H:3 * H]
            h_new = o_g * tanh_c[k * B:(k + 1) * B, :]
            c[l] = c_new_list[k]
            h[l] = h_new
            if l == L - 1:
                top_h[s - l] = h_new                              # stays in vregs

    # Epilogue: sublane-concat the register-resident top-layer sequence
    # (B multiples of 8 -> vreg aligned), one (T*B, H) @ (H, H) MXU pass,
    # one sigmoid, one lane/sublane-dense store.
    seq = jnp.concatenate(top_h, axis=0)                          # (T*B, H)
    y = (jnp.dot(seq, fc_wt_ref[...], preferred_element_type=jnp.float32)
         + fc_b_ref[...])
    out_ref[...] = jax.nn.sigmoid(y)


@jax.jit
def tg_supervisor_forward(x_bth, w_ih, w_hh, b_ih, b_hh, fc_w, fc_b):
    """Forward pass matching TGSupervisor(x).

    x_bth: (B, T, H) batch_first input.
    w_ih, w_hh: (L, 4H, H) PyTorch-layout LSTM weights, gate order (i, f, g, o).
    b_ih, b_hh: (L, 4H) LSTM biases.
    fc_w: (H, H) Linear weight (out, in); fc_b: (H,).
    Returns (B, T, H).
    """
    B, T, H = x_bth.shape
    L = w_ih.shape[0]
    B_pad = ((B + 7) // 8) * 8                         # sublane-align the batch

    # Time-major, batch-padded, flattened input: (T*B_pad, H).
    x_tm = jnp.transpose(x_bth, (1, 0, 2)).astype(jnp.float32)
    if B_pad != B:
        x_tm = jnp.pad(x_tm, ((0, 0), (0, B_pad - B), (0, 0)))
    x_flat = x_tm.reshape(T * B_pad, H)

    # Wrapper-side weight packing (free layout plumbing, no in-kernel XLU
    # work): gate reorder (i,f,g,o) -> (i,f,o,g), transpose to (L, H, 4H),
    # fuse the two biases, K-concat w_ih/w_hh for layers l>0, pre-transpose
    # the FC weight.
    perm = jnp.array([0, 1, 3, 2], jnp.int32)
    w_ih_t = (w_ih.reshape(L, 4, H, H)[:, perm]
              .reshape(L, 4 * H, H).transpose(0, 2, 1)).astype(jnp.float32)
    w_hh_t = (w_hh.reshape(L, 4, H, H)[:, perm]
              .reshape(L, 4 * H, H).transpose(0, 2, 1)).astype(jnp.float32)
    w_ih0_t = w_ih_t[0]                                # (H, 4H)
    w_hh0_t = w_hh_t[0]                                # (H, 4H)
    if L > 1:
        w_cat = jnp.concatenate([w_ih_t[1:], w_hh_t[1:]], axis=1)  # (L-1,2H,4H)
    else:
        w_cat = jnp.zeros((1, 2 * H, 4 * H), jnp.float32)          # unused
    b_k = ((b_ih + b_hh).reshape(L, 4, H)[:, perm]
           .reshape(L, 1, 4 * H)).astype(jnp.float32)
    fc_wt = fc_w.T.astype(jnp.float32)                 # (H_in, H_out)
    fc_b2 = fc_b.reshape(1, H).astype(jnp.float32)

    vmem = pl.BlockSpec(memory_space=pltpu.MemorySpace.VMEM)
    out_flat = pl.pallas_call(
        functools.partial(_tg_supervisor_kernel, T=T, B=B_pad, H=H, L=L),
        out_shape=jax.ShapeDtypeStruct((T * B_pad, H), jnp.float32),
        in_specs=[vmem] * 7,
        out_specs=vmem,
    )(x_flat, w_ih0_t, w_hh0_t, w_cat, b_k, fc_wt, fc_b2)

    out_tm = out_flat.reshape(T, B_pad, H)[:, :B, :]
    return jnp.transpose(out_tm, (1, 0, 2))            # back to (B, T, H)


def init_params(key, hidden_dim=24, num_layer=3):
    """Synthetic PyTorch-layout params (uniform(-1/sqrt(H), 1/sqrt(H)))."""
    H, L = hidden_dim, num_layer
    bound = 1.0 / jnp.sqrt(jnp.float32(H))
    ks = jax.random.split(key, 6)
    w_ih = jax.random.uniform(ks[0], (L, 4 * H, H), jnp.float32, -bound, bound)
    w_hh = jax.random.uniform(ks[1], (L, 4 * H, H), jnp.float32, -bound, bound)
    b_ih = jax.random.uniform(ks[2], (L, 4 * H), jnp.float32, -bound, bound)
    b_hh = jax.random.uniform(ks[3], (L, 4 * H), jnp.float32, -bound, bound)
    fc_w = jax.random.uniform(ks[4], (H, H), jnp.float32, -bound, bound)
    fc_b = jax.random.uniform(ks[5], (H,), jnp.float32, -bound, bound)
    return w_ih, w_hh, b_ih, b_hh, fc_w, fc_b


def reference_forward(x_bth, w_ih, w_hh, b_ih, b_hh, fc_w, fc_b):
    """Pure-JAX reference mirroring torch.nn.LSTM + Linear + Sigmoid."""
    B, T, H = x_bth.shape
    L = w_ih.shape[0]
    seq = jnp.transpose(x_bth, (1, 0, 2)).astype(jnp.float32)  # (T, B, H)
    for layer in range(L):
        h = jnp.zeros((B, H), jnp.float32)
        c = jnp.zeros((B, H), jnp.float32)
        outs = []
        for t in range(T):
            gates = (seq[t] @ w_ih[layer].T + h @ w_hh[layer].T
                     + b_ih[layer] + b_hh[layer])
            i_g = jax.nn.sigmoid(gates[:, 0 * H:1 * H])
            f_g = jax.nn.sigmoid(gates[:, 1 * H:2 * H])
            g_g = jnp.tanh(gates[:, 2 * H:3 * H])
            o_g = jax.nn.sigmoid(gates[:, 3 * H:4 * H])
            c = f_g * c + i_g * g_g
            h = o_g * jnp.tanh(c)
            outs.append(h)
        seq = jnp.stack(outs, axis=0)
    y = jnp.einsum('tbh,oh->tbo', seq, fc_w) + fc_b
    return jnp.transpose(jax.nn.sigmoid(y), (1, 0, 2))


if __name__ == "__main__":
    B, T, H, L = 4, 8, 24, 3  # batch, seq_len, hidden_dim (module default), num_layer

    key = jax.random.PRNGKey(0)
    k_x, k_p = jax.random.split(key)
    x = jax.random.normal(k_x, (B, T, H), jnp.float32)
    params = init_params(k_p, hidden_dim=H, num_layer=L)

    out = jax.block_until_ready(tg_supervisor_forward(x, *params))
    ref = reference_forward(x, *params)

    assert out.shape == (B, T, H), out.shape
    assert jnp.allclose(out, ref, atol=2e-3, rtol=2e-3), (
        float(jnp.max(jnp.abs(out - ref))))

    print("KERNEL_OK")
</pallas_src>

<mosaic_0001>
module attributes {stable_mosaic.version = 11 : i64} {
  func.func @_tg_supervisor_kernel(%arg0: memref<64x24xf32, #tpu.memory_space<vmem>>, %arg1: memref<24x96xf32, #tpu.memory_space<vmem>>, %arg2: memref<24x96xf32, #tpu.memory_space<vmem>>, %arg3: memref<2x48x96xf32, #tpu.memory_space<vmem>>, %arg4: memref<3x1x96xf32, #tpu.memory_space<vmem>>, %arg5: memref<24x24xf32, #tpu.memory_space<vmem>>, %arg6: memref<1x24xf32, #tpu.memory_space<vmem>>, %arg7: memref<64x24xf32, #tpu.memory_space<vmem>>) attributes {dimension_semantics = [], scalar_prefetch = 0 : i64, scratch_operands = 0 : i64, tpu.core_type = #tpu.core_type<tc>} {
    %c0 = arith.constant 0 : index
    %c0_0 = arith.constant 0 : index
    %0 = vector.load %arg0[%c0, %c0_0] : memref<64x24xf32, #tpu.memory_space<vmem>>, vector<64x24xf32>
    %c0_1 = arith.constant 0 : index
    %c0_2 = arith.constant 0 : index
    %1 = vector.load %arg1[%c0_1, %c0_2] : memref<24x96xf32, #tpu.memory_space<vmem>>, vector<24x96xf32>
    %c0_3 = arith.constant 0 : index
    %c0_4 = arith.constant 0 : index
    %2 = vector.load %arg2[%c0_3, %c0_4] : memref<24x96xf32, #tpu.memory_space<vmem>>, vector<24x96xf32>
    %c0_5 = arith.constant 0 : index
    %c0_6 = arith.constant 0 : index
    %c0_7 = arith.constant 0 : index
    %3 = vector.load %arg3[%c0_5, %c0_6, %c0_7] : memref<2x48x96xf32, #tpu.memory_space<vmem>>, vector<1x48x96xf32>
    %4 = vector.shape_cast %3 : vector<1x48x96xf32> to vector<48x96xf32>
    %c1 = arith.constant 1 : index
    %c0_8 = arith.constant 0 : index
    %c0_9 = arith.constant 0 : index
    %5 = vector.load %arg3[%c1, %c0_8, %c0_9] : memref<2x48x96xf32, #tpu.memory_space<vmem>>, vector<1x48x96xf32>
    %6 = vector.shape_cast %5 : vector<1x48x96xf32> to vector<48x96xf32>
    %c0_10 = arith.constant 0 : index
    %c0_11 = arith.constant 0 : index
    %c0_12 = arith.constant 0 : index
    %7 = vector.load %arg4[%c0_10, %c0_11, %c0_12] : memref<3x1x96xf32, #tpu.memory_space<vmem>>, vector<1x1x96xf32>
    %8 = vector.shape_cast %7 : vector<1x1x96xf32> to vector<1x96xf32>
    %c1_13 = arith.constant 1 : index
    %c0_14 = arith.constant 0 : index
    %c0_15 = arith.constant 0 : index
    %9 = vector.load %arg4[%c1_13, %c0_14, %c0_15] : memref<3x1x96xf32, #tpu.memory_space<vmem>>, vector<1x1x96xf32>
    %10 = vector.shape_cast %9 : vector<1x1x96xf32> to vector<1x96xf32>
    %11 = vector.shape_cast %10 : vector<1x96xf32> to vector<1x96xf32>
    %12 = vector.broadcast %11 : vector<1x96xf32> to vector<8x96xf32>
    %c2 = arith.constant 2 : index
    %c0_16 = arith.constant 0 : index
    %c0_17 = arith.constant 0 : index
    %13 = vector.load %arg4[%c2, %c0_16, %c0_17] : memref<3x1x96xf32, #tpu.memory_space<vmem>>, vector<1x1x96xf32>
    %14 = vector.shape_cast %13 : vector<1x1x96xf32> to vector<1x96xf32>
    %15 = vector.shape_cast %14 : vector<1x96xf32> to vector<1x96xf32>
    %16 = vector.broadcast %15 : vector<1x96xf32> to vector<8x96xf32>
    %cst = arith.constant dense<0.000000e+00> : vector<64x96xf32>
    %17 = tpu.matmul %0, %1, %cst {dimension_numbers = #tpu.dot_dimension_numbers<[1], [0], [0], [1], [0, 0, 1, 1], [], []>} : vector<64x24xf32>, vector<24x96xf32>, vector<64x96xf32> -> vector<64x96xf32>
    %18 = vector.broadcast %8 : vector<1x96xf32> to vector<64x96xf32>
    %19 = arith.addf %17, %18 : vector<64x96xf32>
    %cst_18 = arith.constant 0.000000e+00 : f32
    %20 = vector.broadcast %cst_18 : f32 to vector<8x24xf32>
    %21 = vector.extract_strided_slice %19 {offsets = [0, 0], sizes = [8, 96], strides = [1, 1]} : vector<64x96xf32> to vector<8x96xf32>
    %cst_19 = arith.constant dense<0.000000e+00> : vector<8x96xf32>
    %22 = tpu.matmul %20, %2, %cst_19 {dimension_numbers = #tpu.dot_dimension_numbers<[1], [0], [0], [1], [0, 0, 1, 1], [], []>} : vector<8x24xf32>, vector<24x96xf32>, vector<8x96xf32> -> vector<8x96xf32>
    %23 = arith.addf %21, %22 : vector<8x96xf32>
    %24 = vector.extract_strided_slice %23 {offsets = [0, 0], sizes = [8, 72], strides = [1, 1]} : vector<8x96xf32> to vector<8x72xf32>
    %25 = arith.negf %24 : vector<8x72xf32>
    %26 = math.exp %25 : vector<8x72xf32>
    %cst_20 = arith.constant 1.000000e+00 : f32
    %27 = vector.broadcast %cst_20 : f32 to vector<8x72xf32>
    %28 = arith.addf %27, %26 : vector<8x72xf32>
    %29 = arith.divf %27, %28 : vector<8x72xf32>
    %30 = vector.extract_strided_slice %23 {offsets = [0, 72], sizes = [8, 24], strides = [1, 1]} : vector<8x96xf32> to vector<8x24xf32>
    %31 = math.tanh %30 : vector<8x24xf32>
    %32 = vector.extract_strided_slice %29 {offsets = [0, 0], sizes = [8, 24], strides = [1, 1]} : vector<8x72xf32> to vector<8x24xf32>
    %33 = vector.extract_strided_slice %29 {offsets = [0, 24], sizes = [8, 24], strides = [1, 1]} : vector<8x72xf32> to vector<8x24xf32>
    %34 = arith.mulf %33, %20 : vector<8x24xf32>
    %35 = arith.mulf %32, %31 : vector<8x24xf32>
    %36 = arith.addf %34, %35 : vector<8x24xf32>
    %37 = math.tanh %36 : vector<8x24xf32>
    %38 = vector.extract_strided_slice %29 {offsets = [0, 48], sizes = [8, 24], strides = [1, 1]} : vector<8x72xf32> to vector<8x24xf32>
    %39 = arith.mulf %38, %37 : vector<8x24xf32>
    %40 = vector.extract_strided_slice %19 {offsets = [8, 0], sizes = [8, 96], strides = [1, 1]} : vector<64x96xf32> to vector<8x96xf32>
    %cst_21 = arith.constant dense<0.000000e+00> : vector<8x96xf32>
    %41 = tpu.matmul %39, %2, %cst_21 {dimension_numbers = #tpu.dot_dimension_numbers<[1], [0], [0], [1], [0, 0, 1, 1], [], []>} : vector<8x24xf32>, vector<24x96xf32>, vector<8x96xf32> -> vector<8x96xf32>
    %42 = arith.addf %40, %41 : vector<8x96xf32>
    %43 = tpu.concatenate %39, %20 in 1 : vector<8x24xf32>, vector<8x24xf32> -> vector<8x48xf32>
    %cst_22 = arith.constant dense<0.000000e+00> : vector<8x96xf32>
    %44 = tpu.matmul %43, %4, %cst_22 {dimension_numbers = #tpu.dot_dimension_numbers<[1], [0], [0], [1], [0, 0, 1, 1], [], []>} : vector<8x48xf32>, vector<48x96xf32>, vector<8x96xf32> -> vector<8x96xf32>
    %45 = arith.addf %44, %12 : vector<8x96xf32>
    %46 = tpu.concatenate %42, %45 in 0 : vector<8x96xf32>, vector<8x96xf32> -> vector<16x96xf32>
    %47 = vector.extract_strided_slice %46 {offsets = [0, 0], sizes = [16, 72], strides = [1, 1]} : vector<16x96xf32> to vector<16x72xf32>
    %48 = arith.negf %47 : vector<16x72xf32>
    %49 = math.exp %48 : vector<16x72xf32>
    %cst_23 = arith.constant 1.000000e+00 : f32
    %50 = vector.broadcast %cst_23 : f32 to vector<16x72xf32>
    %51 = arith.addf %50, %49 : vector<16x72xf32>
    %52 = arith.divf %50, %51 : vector<16x72xf32>
    %53 = vector.extract_strided_slice %46 {offsets = [0, 72], sizes = [16, 24], strides = [1, 1]} : vector<16x96xf32> to vector<16x24xf32>
    %54 = math.tanh %53 : vector<16x24xf32>
    %55 = vector.extract_strided_slice %52 {offsets = [0, 0], sizes = [8, 24], strides = [1, 1]} : vector<16x72xf32> to vector<8x24xf32>
    %56 = vector.extract_strided_slice %52 {offsets = [0, 24], sizes = [8, 24], strides = [1, 1]} : vector<16x72xf32> to vector<8x24xf32>
    %57 = vector.extract_strided_slice %54 {offsets = [0, 0], sizes = [8, 24], strides = [1, 1]} : vector<16x24xf32> to vector<8x24xf32>
    %58 = arith.mulf %56, %36 : vector<8x24xf32>
    %59 = arith.mulf %55, %57 : vector<8x24xf32>
    %60 = arith.addf %58, %59 : vector<8x24xf32>
    %61 = vector.extract_strided_slice %52 {offsets = [8, 0], sizes = [8, 24], strides = [1, 1]} : vector<16x72xf32> to vector<8x24xf32>
    %62 = vector.extract_strided_slice %52 {offsets = [8, 24], sizes = [8, 24], strides = [1, 1]} : vector<16x72xf32> to vector<8x24xf32>
    %63 = vector.extract_strided_slice %54 {offsets = [8, 0], sizes = [8, 24], strides = [1, 1]} : vector<16x24xf32> to vector<8x24xf32>
    %64 = arith.mulf %62, %20 : vector<8x24xf32>
    %65 = arith.mulf %61, %63 : vector<8x24xf32>
    %66 = arith.addf %64, %65 : vector<8x24xf32>
    %67 = tpu.concatenate %60, %66 in 0 : vector<8x24xf32>, vector<8x24xf32> -> vector<16x24xf32>
    %68 = math.tanh %67 : vector<16x24xf32>
    %69 = vector.extract_strided_slice %52 {offsets = [0, 48], sizes = [8, 24], strides = [1, 1]} : vector<16x72xf32> to vector<8x24xf32>
    %70 = vector.extract_strided_slice %68 {offsets = [0, 0], sizes = [8, 24], strides = [1, 1]} : vector<16x24xf32> to vector<8x24xf32>
    %71 = arith.mulf %69, %70 : vector<8x24xf32>
    %72 = vector.extract_strided_slice %52 {offsets = [8, 48], sizes = [8, 24], strides = [1, 1]} : vector<16x72xf32> to vector<8x24xf32>
    %73 = vector.extract_strided_slice %68 {offsets = [8, 0], sizes = [8, 24], strides = [1, 1]} : vector<16x24xf32> to vector<8x24xf32>
    %74 = arith.mulf %72, %73 : vector<8x24xf32>
    %75 = vector.extract_strided_slice %19 {offsets = [16, 0], sizes = [8, 96], strides = [1, 1]} : vector<64x96xf32> to vector<8x96xf32>
    %cst_24 = arith.constant dense<0.000000e+00> : vector<8x96xf32>
    %76 = tpu.matmul %71, %2, %cst_24 {dimension_numbers = #tpu.dot_dimension_numbers<[1], [0], [0], [1], [0, 0, 1, 1], [], []>} : vector<8x24xf32>, vector<24x96xf32>, vector<8x96xf32> -> vector<8x96xf32>
    %77 = arith.addf %75, %76 : vector<8x96xf32>
    %78 = tpu.concatenate %71, %74 in 1 : vector<8x24xf32>, vector<8x24xf32> -> vector<8x48xf32>
    %cst_25 = arith.constant dense<0.000000e+00> : vector<8x96xf32>
    %79 = tpu.matmul %78, %4, %cst_25 {dimension_numbers = #tpu.dot_dimension_numbers<[1], [0], [0], [1], [0, 0, 1, 1], [], []>} : vector<8x48xf32>, vector<48x96xf32>, vector<8x96xf32> -> vector<8x96xf32>
    %80 = arith.addf %79, %12 : vector<8x96xf32>
    %81 = tpu.concatenate %74, %20 in 1 : vector<8x24xf32>, vector<8x24xf32> -> vector<8x48xf32>
    %cst_26 = arith.constant dense<0.000000e+00> : vector<8x96xf32>
    %82 = tpu.matmul %81, %6, %cst_26 {dimension_numbers = #tpu.dot_dimension_numbers<[1], [0], [0], [1], [0, 0, 1, 1], [], []>} : vector<8x48xf32>, vector<48x96xf32>, vector<8x96xf32> -> vector<8x96xf32>
    %83 = arith.addf %82, %16 : vector<8x96xf32>
    %84 = tpu.concatenate %77, %80, %83 in 0 : vector<8x96xf32>, vector<8x96xf32>, vector<8x96xf32> -> vector<24x96xf32>
    %85 = vector.extract_strided_slice %84 {offsets = [0, 0], sizes = [24, 72], strides = [1, 1]} : vector<24x96xf32> to vector<24x72xf32>
    %86 = arith.negf %85 : vector<24x72xf32>
    %87 = math.exp %86 : vector<24x72xf32>
    %cst_27 = arith.constant 1.000000e+00 : f32
    %88 = vector.broadcast %cst_27 : f32 to vector<24x72xf32>
    %89 = arith.addf %88, %87 : vector<24x72xf32>
    %90 = arith.divf %88, %89 : vector<24x72xf32>
    %91 = vector.extract_strided_slice %84 {offsets = [0, 72], sizes = [24, 24], strides = [1, 1]} : vector<24x96xf32> to vector<24x24xf32>
    %92 = math.tanh %91 : vector<24x24xf32>
    %93 = vector.extract_strided_slice %90 {offsets = [0, 0], sizes = [8, 24], strides = [1, 1]} : vector<24x72xf32> to vector<8x24xf32>
    %94 = vector.extract_strided_slice %90 {offsets = [0, 24], sizes = [8, 24], strides = [1, 1]} : vector<24x72xf32> to vector<8x24xf32>
    %95 = vector.extract_strided_slice %92 {offsets = [0, 0], sizes = [8, 24], strides = [1, 1]} : vector<24x24xf32> to vector<8x24xf32>
    %96 = arith.mulf %94, %60 : vector<8x24xf32>
    %97 = arith.mulf %93, %95 : vector<8x24xf32>
    %98 = arith.addf %96, %97 : vector<8x24xf32>
    %99 = vector.extract_strided_slice %90 {offsets = [8, 0], sizes = [8, 24], strides = [1, 1]} : vector<24x72xf32> to vector<8x24xf32>
    %100 = vector.extract_strided_slice %90 {offsets = [8, 24], sizes = [8, 24], strides = [1, 1]} : vector<24x72xf32> to vector<8x24xf32>
    %101 = vector.extract_strided_slice %92 {offsets = [8, 0], sizes = [8, 24], strides = [1, 1]} : vector<24x24xf32> to vector<8x24xf32>
    %102 = arith.mulf %100, %66 : vector<8x24xf32>
    %103 = arith.mulf %99, %101 : vector<8x24xf32>
    %104 = arith.addf %102, %103 : vector<8x24xf32>
    %105 = vector.extract_strided_slice %90 {offsets = [16, 0], sizes = [8, 24], strides = [1, 1]} : vector<24x72xf32> to vector<8x24xf32>
    %106 = vector.extract_strided_slice %90 {offsets = [16, 24], sizes = [8, 24], strides = [1, 1]} : vector<24x72xf32> to vector<8x24xf32>
    %107 = vector.extract_strided_slice %92 {offsets = [16, 0], sizes = [8, 24], strides = [1, 1]} : vector<24x24xf32> to vector<8x24xf32>
    %108 = arith.mulf %106, %20 : vector<8x24xf32>
    %109 = arith.mulf %105, %107 : vector<8x24xf32>
    %110 = arith.addf %108, %109 : vector<8x24xf32>
    %111 = tpu.concatenate %98, %104, %110 in 0 : vector<8x24xf32>, vector<8x24xf32>, vector<8x24xf32> -> vector<24x24xf32>
    %112 = math.tanh %111 : vector<24x24xf32>
    %113 = vector.extract_strided_slice %90 {offsets = [0, 48], sizes = [8, 24], strides = [1, 1]} : vector<24x72xf32> to vector<8x24xf32>
    %114 = vector.extract_strided_slice %112 {offsets = [0, 0], sizes = [8, 24], strides = [1, 1]} : vector<24x24xf32> to vector<8x24xf32>
    %115 = arith.mulf %113, %114 : vector<8x24xf32>
    %116 = vector.extract_strided_slice %90 {offsets = [8, 48], sizes = [8, 24], strides = [1, 1]} : vector<24x72xf32> to vector<8x24xf32>
    %117 = vector.extract_strided_slice %112 {offsets = [8, 0], sizes = [8, 24], strides = [1, 1]} : vector<24x24xf32> to vector<8x24xf32>
    %118 = arith.mulf %116, %117 : vector<8x24xf32>
    %119 = vector.extract_strided_slice %90 {offsets = [16, 48], sizes = [8, 24], strides = [1, 1]} : vector<24x72xf32> to vector<8x24xf32>
    %120 = vector.extract_strided_slice %112 {offsets = [16, 0], sizes = [8, 24], strides = [1, 1]} : vector<24x24xf32> to vector<8x24xf32>
    %121 = arith.mulf %119, %120 : vector<8x24xf32>
    %122 = vector.extract_strided_slice %19 {offsets = [24, 0], sizes = [8, 96], strides = [1, 1]} : vector<64x96xf32> to vector<8x96xf32>
    %cst_28 = arith.constant dense<0.000000e+00> : vector<8x96xf32>
    %123 = tpu.matmul %115, %2, %cst_28 {dimension_numbers = #tpu.dot_dimension_numbers<[1], [0], [0], [1], [0, 0, 1, 1], [], []>} : vector<8x24xf32>, vector<24x96xf32>, vector<8x96xf32> -> vector<8x96xf32>
    %124 = arith.addf %122, %123 : vector<8x96xf32>
    %125 = tpu.concatenate %115, %118 in 1 : vector<8x24xf32>, vector<8x24xf32> -> vector<8x48xf32>
    %cst_29 = arith.constant dense<0.000000e+00> : vector<8x96xf32>
    %126 = tpu.matmul %125, %4, %cst_29 {dimension_numbers = #tpu.dot_dimension_numbers<[1], [0], [0], [1], [0, 0, 1, 1], [], []>} : vector<8x48xf32>, vector<48x96xf32>, vector<8x96xf32> -> vector<8x96xf32>
    %127 = arith.addf %126, %12 : vector<8x96xf32>
    %128 = tpu.concatenate %118, %121 in 1 : vector<8x24xf32>, vector<8x24xf32> -> vector<8x48xf32>
    %cst_30 = arith.constant dense<0.000000e+00> : vector<8x96xf32>
    %129 = tpu.matmul %128, %6, %cst_30 {dimension_numbers = #tpu.dot_dimension_numbers<[1], [0], [0], [1], [0, 0, 1, 1], [], []>} : vector<8x48xf32>, vector<48x96xf32>, vector<8x96xf32> -> vector<8x96xf32>
    %130 = arith.addf %129, %16 : vector<8x96xf32>
    %131 = tpu.concatenate %124, %127, %130 in 0 : vector<8x96xf32>, vector<8x96xf32>, vector<8x96xf32> -> vector<24x96xf32>
    %132 = vector.extract_strided_slice %131 {offsets = [0, 0], sizes = [24, 72], strides = [1, 1]} : vector<24x96xf32> to vector<24x72xf32>
    %133 = arith.negf %132 : vector<24x72xf32>
    %134 = math.exp %133 : vector<24x72xf32>
    %cst_31 = arith.constant 1.000000e+00 : f32
    %135 = vector.broadcast %cst_31 : f32 to vector<24x72xf32>
    %136 = arith.addf %135, %134 : vector<24x72xf32>
    %137 = arith.divf %135, %136 : vector<24x72xf32>
    %138 = vector.extract_strided_slice %131 {offsets = [0, 72], sizes = [24, 24], strides = [1, 1]} : vector<24x96xf32> to vector<24x24xf32>
    %139 = math.tanh %138 : vector<24x24xf32>
    %140 = vector.extract_strided_slice %137 {offsets = [0, 0], sizes = [8, 24], strides = [1, 1]} : vector<24x72xf32> to vector<8x24xf32>
    %141 = vector.extract_strided_slice %137 {offsets = [0, 24], sizes = [8, 24], strides = [1, 1]} : vector<24x72xf32> to vector<8x24xf32>
    %142 = vector.extract_strided_slice %139 {offsets = [0, 0], sizes = [8, 24], strides = [1, 1]} : vector<24x24xf32> to vector<8x24xf32>
    %143 = arith.mulf %141, %98 : vector<8x24xf32>
    %144 = arith.mulf %140, %142 : vector<8x24xf32>
    %145 = arith.addf %143, %144 : vector<8x24xf32>
    %146 = vector.extract_strided_slice %137 {offsets = [8, 0], sizes = [8, 24], strides = [1, 1]} : vector<24x72xf32> to vector<8x24xf32>
    %147 = vector.extract_strided_slice %137 {offsets = [8, 24], sizes = [8, 24], strides = [1, 1]} : vector<24x72xf32> to vector<8x24xf32>
    %148 = vector.extract_strided_slice %139 {offsets = [8, 0], sizes = [8, 24], strides = [1, 1]} : vector<24x24xf32> to vector<8x24xf32>
    %149 = arith.mulf %147, %104 : vector<8x24xf32>
    %150 = arith.mulf %146, %148 : vector<8x24xf32>
    %151 = arith.addf %149, %150 : vector<8x24xf32>
    %152 = vector.extract_strided_slice %137 {offsets = [16, 0], sizes = [8, 24], strides = [1, 1]} : vector<24x72xf32> to vector<8x24xf32>
    %153 = vector.extract_strided_slice %137 {offsets = [16, 24], sizes = [8, 24], strides = [1, 1]} : vector<24x72xf32> to vector<8x24xf32>
    %154 = vector.extract_strided_slice %139 {offsets = [16, 0], sizes = [8, 24], strides = [1, 1]} : vector<24x24xf32> to vector<8x24xf32>
    %155 = arith.mulf %153, %110 : vector<8x24xf32>
    %156 = arith.mulf %152, %154 : vector<8x24xf32>
    %157 = arith.addf %155, %156 : vector<8x24xf32>
    %158 = tpu.concatenate %145, %151, %157 in 0 : vector<8x24xf32>, vector<8x24xf32>, vector<8x24xf32> -> vector<24x24xf32>
    %159 = math.tanh %158 : vector<24x24xf32>
    %160 = vector.extract_strided_slice %137 {offsets = [0, 48], sizes = [8, 24], strides = [1, 1]} : vector<24x72xf32> to vector<8x24xf32>
    %161 = vector.extract_strided_slice %159 {offsets = [0, 0], sizes = [8, 24], strides = [1, 1]} : vector<24x24xf32> to vector<8x24xf32>
    %162 = arith.mulf %160, %161 : vector<8x24xf32>
    %163 = vector.extract_strided_slice %137 {offsets = [8, 48], sizes = [8, 24], strides = [1, 1]} : vector<24x72xf32> to vector<8x24xf32>
    %164 = vector.extract_strided_slice %159 {offsets = [8, 0], sizes = [8, 24], strides = [1, 1]} : vector<24x24xf32> to vector<8x24xf32>
    %165 = arith.mulf %163, %164 : vector<8x24xf32>
    %166 = vector.extract_strided_slice %137 {offsets = [16, 48], sizes = [8, 24], strides = [1, 1]} : vector<24x72xf32> to vector<8x24xf32>
    %167 = vector.extract_strided_slice %159 {offsets = [16, 0], sizes = [8, 24], strides = [1, 1]} : vector<24x24xf32> to vector<8x24xf32>
    %168 = arith.mulf %166, %167 : vector<8x24xf32>
    %169 = vector.extract_strided_slice %19 {offsets = [32, 0], sizes = [8, 96], strides = [1, 1]} : vector<64x96xf32> to vector<8x96xf32>
    %cst_32 = arith.constant dense<0.000000e+00> : vector<8x96xf32>
    %170 = tpu.matmul %162, %2, %cst_32 {dimension_numbers = #tpu.dot_dimension_numbers<[1], [0], [0], [1], [0, 0, 1, 1], [], []>} : vector<8x24xf32>, vector<24x96xf32>, vector<8x96xf32> -> vector<8x96xf32>
    %171 = arith.addf %169, %170 : vector<8x96xf32>
    %172 = tpu.concatenate %162, %165 in 1 : vector<8x24xf32>, vector<8x24xf32> -> vector<8x48xf32>
    %cst_33 = arith.constant dense<0.000000e+00> : vector<8x96xf32>
    %173 = tpu.matmul %172, %4, %cst_33 {dimension_numbers = #tpu.dot_dimension_numbers<[1], [0], [0], [1], [0, 0, 1, 1], [], []>} : vector<8x48xf32>, vector<48x96xf32>, vector<8x96xf32> -> vector<8x96xf32>
    %174 = arith.addf %173, %12 : vector<8x96xf32>
    %175 = tpu.concatenate %165, %168 in 1 : vector<8x24xf32>, vector<8x24xf32> -> vector<8x48xf32>
    %cst_34 = arith.constant dense<0.000000e+00> : vector<8x96xf32>
    %176 = tpu.matmul %175, %6, %cst_34 {dimension_numbers = #tpu.dot_dimension_numbers<[1], [0], [0], [1], [0, 0, 1, 1], [], []>} : vector<8x48xf32>, vector<48x96xf32>, vector<8x96xf32> -> vector<8x96xf32>
    %177 = arith.addf %176, %16 : vector<8x96xf32>
    %178 = tpu.concatenate %171, %174, %177 in 0 : vector<8x96xf32>, vector<8x96xf32>, vector<8x96xf32> -> vector<24x96xf32>
    %179 = vector.extract_strided_slice %178 {offsets = [0, 0], sizes = [24, 72], strides = [1, 1]} : vector<24x96xf32> to vector<24x72xf32>
    %180 = arith.negf %179 : vector<24x72xf32>
    %181 = math.exp %180 : vector<24x72xf32>
    %cst_35 = arith.constant 1.000000e+00 : f32
    %182 = vector.broadcast %cst_35 : f32 to vector<24x72xf32>
    %183 = arith.addf %182, %181 : vector<24x72xf32>
    %184 = arith.divf %182, %183 : vector<24x72xf32>
    %185 = vector.extract_strided_slice %178 {offsets = [0, 72], sizes = [24, 24], strides = [1, 1]} : vector<24x96xf32> to vector<24x24xf32>
    %186 = math.tanh %185 : vector<24x24xf32>
    %187 = vector.extract_strided_slice %184 {offsets = [0, 0], sizes = [8, 24], strides = [1, 1]} : vector<24x72xf32> to vector<8x24xf32>
    %188 = vector.extract_strided_slice %184 {offsets = [0, 24], sizes = [8, 24], strides = [1, 1]} : vector<24x72xf32> to vector<8x24xf32>
    %189 = vector.extract_strided_slice %186 {offsets = [0, 0], sizes = [8, 24], strides = [1, 1]} : vector<24x24xf32> to vector<8x24xf32>
    %190 = arith.mulf %188, %145 : vector<8x24xf32>
    %191 = arith.mulf %187, %189 : vector<8x24xf32>
    %192 = arith.addf %190, %191 : vector<8x24xf32>
    %193 = vector.extract_strided_slice %184 {offsets = [8, 0], sizes = [8, 24], strides = [1, 1]} : vector<24x72xf32> to vector<8x24xf32>
    %194 = vector.extract_strided_slice %184 {offsets = [8, 24], sizes = [8, 24], strides = [1, 1]} : vector<24x72xf32> to vector<8x24xf32>
    %195 = vector.extract_strided_slice %186 {offsets = [8, 0], sizes = [8, 24], strides = [1, 1]} : vector<24x24xf32> to vector<8x24xf32>
    %196 = arith.mulf %194, %151 : vector<8x24xf32>
    %197 = arith.mulf %193, %195 : vector<8x24xf32>
    %198 = arith.addf %196, %197 : vector<8x24xf32>
    %199 = vector.extract_strided_slice %184 {offsets = [16, 0], sizes = [8, 24], strides = [1, 1]} : vector<24x72xf32> to vector<8x24xf32>
    %200 = vector.extract_strided_slice %184 {offsets = [16, 24], sizes = [8, 24], strides = [1, 1]} : vector<24x72xf32> to vector<8x24xf32>
    %201 = vector.extract_strided_slice %186 {offsets = [16, 0], sizes = [8, 24], strides = [1, 1]} : vector<24x24xf32> to vector<8x24xf32>
    %202 = arith.mulf %200, %157 : vector<8x24xf32>
    %203 = arith.mulf %199, %201 : vector<8x24xf32>
    %204 = arith.addf %202, %203 : vector<8x24xf32>
    %205 = tpu.concatenate %192, %198, %204 in 0 : vector<8x24xf32>, vector<8x24xf32>, vector<8x24xf32> -> vector<24x24xf32>
    %206 = math.tanh %205 : vector<24x24xf32>
    %207 = vector.extract_strided_slice %184 {offsets = [0, 48], sizes = [8, 24], strides = [1, 1]} : vector<24x72xf32> to vector<8x24xf32>
    %208 = vector.extract_strided_slice %206 {offsets = [0, 0], sizes = [8, 24], strides = [1, 1]} : vector<24x24xf32> to vector<8x24xf32>
    %209 = arith.mulf %207, %208 : vector<8x24xf32>
    %210 = vector.extract_strided_slice %184 {offsets = [8, 48], sizes = [8, 24], strides = [1, 1]} : vector<24x72xf32> to vector<8x24xf32>
    %211 = vector.extract_strided_slice %206 {offsets = [8, 0], sizes = [8, 24], strides = [1, 1]} : vector<24x24xf32> to vector<8x24xf32>
    %212 = arith.mulf %210, %211 : vector<8x24xf32>
    %213 = vector.extract_strided_slice %184 {offsets = [16, 48], sizes = [8, 24], strides = [1, 1]} : vector<24x72xf32> to vector<8x24xf32>
    %214 = vector.extract_strided_slice %206 {offsets = [16, 0], sizes = [8, 24], strides = [1, 1]} : vector<24x24xf32> to vector<8x24xf32>
    %215 = arith.mulf %213, %214 : vector<8x24xf32>
    %216 = vector.extract_strided_slice %19 {offsets = [40, 0], sizes = [8, 96], strides = [1, 1]} : vector<64x96xf32> to vector<8x96xf32>
    %cst_36 = arith.constant dense<0.000000e+00> : vector<8x96xf32>
    %217 = tpu.matmul %209, %2, %cst_36 {dimension_numbers = #tpu.dot_dimension_numbers<[1], [0], [0], [1], [0, 0, 1, 1], [], []>} : vector<8x24xf32>, vector<24x96xf32>, vector<8x96xf32> -> vector<8x96xf32>
    %218 = arith.addf %216, %217 : vector<8x96xf32>
    %219 = tpu.concatenate %209, %212 in 1 : vector<8x24xf32>, vector<8x24xf32> -> vector<8x48xf32>
    %cst_37 = arith.constant dense<0.000000e+00> : vector<8x96xf32>
    %220 = tpu.matmul %219, %4, %cst_37 {dimension_numbers = #tpu.dot_dimension_numbers<[1], [0], [0], [1], [0, 0, 1, 1], [], []>} : vector<8x48xf32>, vector<48x96xf32>, vector<8x96xf32> -> vector<8x96xf32>
    %221 = arith.addf %220, %12 : vector<8x96xf32>
    %222 = tpu.concatenate %212, %215 in 1 : vector<8x24xf32>, vector<8x24xf32> -> vector<8x48xf32>
    %cst_38 = arith.constant dense<0.000000e+00> : vector<8x96xf32>
    %223 = tpu.matmul %222, %6, %cst_38 {dimension_numbers = #tpu.dot_dimension_numbers<[1], [0], [0], [1], [0, 0, 1, 1], [], []>} : vector<8x48xf32>, vector<48x96xf32>, vector<8x96xf32> -> vector<8x96xf32>
    %224 = arith.addf %223, %16 : vector<8x96xf32>
    %225 = tpu.concatenate %218, %221, %224 in 0 : vector<8x96xf32>, vector<8x96xf32>, vector<8x96xf32> -> vector<24x96xf32>
    %226 = vector.extract_strided_slice %225 {offsets = [0, 0], sizes = [24, 72], strides = [1, 1]} : vector<24x96xf32> to vector<24x72xf32>
    %227 = arith.negf %226 : vector<24x72xf32>
    %228 = math.exp %227 : vector<24x72xf32>
    %cst_39 = arith.constant 1.000000e+00 : f32
    %229 = vector.broadcast %cst_39 : f32 to vector<24x72xf32>
    %230 = arith.addf %229, %228 : vector<24x72xf32>
    %231 = arith.divf %229, %230 : vector<24x72xf32>
    %232 = vector.extract_strided_slice %225 {offsets = [0, 72], sizes = [24, 24], strides = [1, 1]} : vector<24x96xf32> to vector<24x24xf32>
    %233 = math.tanh %232 : vector<24x24xf32>
    %234 = vector.extract_strided_slice %231 {offsets = [0, 0], sizes = [8, 24], strides = [1, 1]} : vector<24x72xf32> to vector<8x24xf32>
    %235 = vector.extract_strided_slice %231 {offsets = [0, 24], sizes = [8, 24], strides = [1, 1]} : vector<24x72xf32> to vector<8x24xf32>
    %236 = vector.extract_strided_slice %233 {offsets = [0, 0], sizes = [8, 24], strides = [1, 1]} : vector<24x24xf32> to vector<8x24xf32>
    %237 = arith.mulf %235, %192 : vector<8x24xf32>
    %238 = arith.mulf %234, %236 : vector<8x24xf32>
    %239 = arith.addf %237, %238 : vector<8x24xf32>
    %240 = vector.extract_strided_slice %231 {offsets = [8, 0], sizes = [8, 24], strides = [1, 1]} : vector<24x72xf32> to vector<8x24xf32>
    %241 = vector.extract_strided_slice %231 {offsets = [8, 24], sizes = [8, 24], strides = [1, 1]} : vector<24x72xf32> to vector<8x24xf32>
    %242 = vector.extract_strided_slice %233 {offsets = [8, 0], sizes = [8, 24], strides = [1, 1]} : vector<24x24xf32> to vector<8x24xf32>
    %243 = arith.mulf %241, %198 : vector<8x24xf32>
    %244 = arith.mulf %240, %242 : vector<8x24xf32>
    %245 = arith.addf %243, %244 : vector<8x24xf32>
    %246 = vector.extract_strided_slice %231 {offsets = [16, 0], sizes = [8, 24], strides = [1, 1]} : vector<24x72xf32> to vector<8x24xf32>
    %247 = vector.extract_strided_slice %231 {offsets = [16, 24], sizes = [8, 24], strides = [1, 1]} : vector<24x72xf32> to vector<8x24xf32>
    %248 = vector.extract_strided_slice %233 {offsets = [16, 0], sizes = [8, 24], strides = [1, 1]} : vector<24x24xf32> to vector<8x24xf32>
    %249 = arith.mulf %247, %204 : vector<8x24xf32>
    %250 = arith.mulf %246, %248 : vector<8x24xf32>
    %251 = arith.addf %249, %250 : vector<8x24xf32>
    %252 = tpu.concatenate %239, %245, %251 in 0 : vector<8x24xf32>, vector<8x24xf32>, vector<8x24xf32> -> vector<24x24xf32>
    %253 = math.tanh %252 : vector<24x24xf32>
    %254 = vector.extract_strided_slice %231 {offsets = [0, 48], sizes = [8, 24], strides = [1, 1]} : vector<24x72xf32> to vector<8x24xf32>
    %255 = vector.extract_strided_slice %253 {offsets = [0, 0], sizes = [8, 24], strides = [1, 1]} : vector<24x24xf32> to vector<8x24xf32>
    %256 = arith.mulf %254, %255 : vector<8x24xf32>
    %257 = vector.extract_strided_slice %231 {offsets = [8, 48], sizes = [8, 24], strides = [1, 1]} : vector<24x72xf32> to vector<8x24xf32>
    %258 = vector.extract_strided_slice %253 {offsets = [8, 0], sizes = [8, 24], strides = [1, 1]} : vector<24x24xf32> to vector<8x24xf32>
    %259 = arith.mulf %257, %258 : vector<8x24xf32>
    %260 = vector.extract_strided_slice %231 {offsets = [16, 48], sizes = [8, 24], strides = [1, 1]} : vector<24x72xf32> to vector<8x24xf32>
    %261 = vector.extract_strided_slice %253 {offsets = [16, 0], sizes = [8, 24], strides = [1, 1]} : vector<24x24xf32> to vector<8x24xf32>
    %262 = arith.mulf %260, %261 : vector<8x24xf32>
    %263 = vector.extract_strided_slice %19 {offsets = [48, 0], sizes = [8, 96], strides = [1, 1]} : vector<64x96xf32> to vector<8x96xf32>
    %cst_40 = arith.constant dense<0.000000e+00> : vector<8x96xf32>
    %264 = tpu.matmul %256, %2, %cst_40 {dimension_numbers = #tpu.dot_dimension_numbers<[1], [0], [0], [1], [0, 0, 1, 1], [], []>} : vector<8x24xf32>, vector<24x96xf32>, vector<8x96xf32> -> vector<8x96xf32>
    %265 = arith.addf %263, %264 : vector<8x96xf32>
    %266 = tpu.concatenate %256, %259 in 1 : vector<8x24xf32>, vector<8x24xf32> -> vector<8x48xf32>
    %cst_41 = arith.constant dense<0.000000e+00> : vector<8x96xf32>
    %267 = tpu.matmul %266, %4, %cst_41 {dimension_numbers = #tpu.dot_dimension_numbers<[1], [0], [0], [1], [0, 0, 1, 1], [], []>} : vector<8x48xf32>, vector<48x96xf32>, vector<8x96xf32> -> vector<8x96xf32>
    %268 = arith.addf %267, %12 : vector<8x96xf32>
    %269 = tpu.concatenate %259, %262 in 1 : vector<8x24xf32>, vector<8x24xf32> -> vector<8x48xf32>
    %cst_42 = arith.constant dense<0.000000e+00> : vector<8x96xf32>
    %270 = tpu.matmul %269, %6, %cst_42 {dimension_numbers = #tpu.dot_dimension_numbers<[1], [0], [0], [1], [0, 0, 1, 1], [], []>} : vector<8x48xf32>, vector<48x96xf32>, vector<8x96xf32> -> vector<8x96xf32>
    %271 = arith.addf %270, %16 : vector<8x96xf32>
    %272 = tpu.concatenate %265, %268, %271 in 0 : vector<8x96xf32>, vector<8x96xf32>, vector<8x96xf32> -> vector<24x96xf32>
    %273 = vector.extract_strided_slice %272 {offsets = [0, 0], sizes = [24, 72], strides = [1, 1]} : vector<24x96xf32> to vector<24x72xf32>
    %274 = arith.negf %273 : vector<24x72xf32>
    %275 = math.exp %274 : vector<24x72xf32>
    %cst_43 = arith.constant 1.000000e+00 : f32
    %276 = vector.broadcast %cst_43 : f32 to vector<24x72xf32>
    %277 = arith.addf %276, %275 : vector<24x72xf32>
    %278 = arith.divf %276, %277 : vector<24x72xf32>
    %279 = vector.extract_strided_slice %272 {offsets = [0, 72], sizes = [24, 24], strides = [1, 1]} : vector<24x96xf32> to vector<24x24xf32>
    %280 = math.tanh %279 : vector<24x24xf32>
    %281 = vector.extract_strided_slice %278 {offsets = [0, 0], sizes = [8, 24], strides = [1, 1]} : vector<24x72xf32> to vector<8x24xf32>
    %282 = vector.extract_strided_slice %278 {offsets = [0, 24], sizes = [8, 24], strides = [1, 1]} : vector<24x72xf32> to vector<8x24xf32>
    %283 = vector.extract_strided_slice %280 {offsets = [0, 0], sizes = [8, 24], strides = [1, 1]} : vector<24x24xf32> to vector<8x24xf32>
    %284 = arith.mulf %282, %239 : vector<8x24xf32>
    %285 = arith.mulf %281, %283 : vector<8x24xf32>
    %286 = arith.addf %284, %285 : vector<8x24xf32>
    %287 = vector.extract_strided_slice %278 {offsets = [8, 0], sizes = [8, 24], strides = [1, 1]} : vector<24x72xf32> to vector<8x24xf32>
    %288 = vector.extract_strided_slice %278 {offsets = [8, 24], sizes = [8, 24], strides = [1, 1]} : vector<24x72xf32> to vector<8x24xf32>
    %289 = vector.extract_strided_slice %280 {offsets = [8, 0], sizes = [8, 24], strides = [1, 1]} : vector<24x24xf32> to vector<8x24xf32>
    %290 = arith.mulf %288, %245 : vector<8x24xf32>
    %291 = arith.mulf %287, %289 : vector<8x24xf32>
    %292 = arith.addf %290, %291 : vector<8x24xf32>
    %293 = vector.extract_strided_slice %278 {offsets = [16, 0], sizes = [8, 24], strides = [1, 1]} : vector<24x72xf32> to vector<8x24xf32>
    %294 = vector.extract_strided_slice %278 {offsets = [16, 24], sizes = [8, 24], strides = [1, 1]} : vector<24x72xf32> to vector<8x24xf32>
    %295 = vector.extract_strided_slice %280 {offsets = [16, 0], sizes = [8, 24], strides = [1, 1]} : vector<24x24xf32> to vector<8x24xf32>
    %296 = arith.mulf %294, %251 : vector<8x24xf32>
    %297 = arith.mulf %293, %295 : vector<8x24xf32>
    %298 = arith.addf %296, %297 : vector<8x24xf32>
    %299 = tpu.concatenate %286, %292, %298 in 0 : vector<8x24xf32>, vector<8x24xf32>, vector<8x24xf32> -> vector<24x24xf32>
    %300 = math.tanh %299 : vector<24x24xf32>
    %301 = vector.extract_strided_slice %278 {offsets = [0, 48], sizes = [8, 24], strides = [1, 1]} : vector<24x72xf32> to vector<8x24xf32>
    %302 = vector.extract_strided_slice %300 {offsets = [0, 0], sizes = [8, 24], strides = [1, 1]} : vector<24x24xf32> to vector<8x24xf32>
    %303 = arith.mulf %301, %302 : vector<8x24xf32>
    %304 = vector.extract_strided_slice %278 {offsets = [8, 48], sizes = [8, 24], strides = [1, 1]} : vector<24x72xf32> to vector<8x24xf32>
    %305 = vector.extract_strided_slice %300 {offsets = [8, 0], sizes = [8, 24], strides = [1, 1]} : vector<24x24xf32> to vector<8x24xf32>
    %306 = arith.mulf %304, %305 : vector<8x24xf32>
    %307 = vector.extract_strided_slice %278 {offsets = [16, 48], sizes = [8, 24], strides = [1, 1]} : vector<24x72xf32> to vector<8x24xf32>
    %308 = vector.extract_strided_slice %300 {offsets = [16, 0], sizes = [8, 24], strides = [1, 1]} : vector<24x24xf32> to vector<8x24xf32>
    %309 = arith.mulf %307, %308 : vector<8x24xf32>
    %310 = vector.extract_strided_slice %19 {offsets = [56, 0], sizes = [8, 96], strides = [1, 1]} : vector<64x96xf32> to vector<8x96xf32>
    %cst_44 = arith.constant dense<0.000000e+00> : vector<8x96xf32>
    %311 = tpu.matmul %303, %2, %cst_44 {dimension_numbers = #tpu.dot_dimension_numbers<[1], [0], [0], [1], [0, 0, 1, 1], [], []>} : vector<8x24xf32>, vector<24x96xf32>, vector<8x96xf32> -> vector<8x96xf32>
    %312 = arith.addf %310, %311 : vector<8x96xf32>
    %313 = tpu.concatenate %303, %306 in 1 : vector<8x24xf32>, vector<8x24xf32> -> vector<8x48xf32>
    %cst_45 = arith.constant dense<0.000000e+00> : vector<8x96xf32>
    %314 = tpu.matmul %313, %4, %cst_45 {dimension_numbers = #tpu.dot_dimension_numbers<[1], [0], [0], [1], [0, 0, 1, 1], [], []>} : vector<8x48xf32>, vector<48x96xf32>, vector<8x96xf32> -> vector<8x96xf32>
    %315 = arith.addf %314, %12 : vector<8x96xf32>
    %316 = tpu.concatenate %306, %309 in 1 : vector<8x24xf32>, vector<8x24xf32> -> vector<8x48xf32>
    %cst_46 = arith.constant dense<0.000000e+00> : vector<8x96xf32>
    %317 = tpu.matmul %316, %6, %cst_46 {dimension_numbers = #tpu.dot_dimension_numbers<[1], [0], [0], [1], [0, 0, 1, 1], [], []>} : vector<8x48xf32>, vector<48x96xf32>, vector<8x96xf32> -> vector<8x96xf32>
    %318 = arith.addf %317, %16 : vector<8x96xf32>
    %319 = tpu.concatenate %312, %315, %318 in 0 : vector<8x96xf32>, vector<8x96xf32>, vector<8x96xf32> -> vector<24x96xf32>
    %320 = vector.extract_strided_slice %319 {offsets = [0, 0], sizes = [24, 72], strides = [1, 1]} : vector<24x96xf32> to vector<24x72xf32>
    %321 = arith.negf %320 : vector<24x72xf32>
    %322 = math.exp %321 : vector<24x72xf32>
    %cst_47 = arith.constant 1.000000e+00 : f32
    %323 = vector.broadcast %cst_47 : f32 to vector<24x72xf32>
    %324 = arith.addf %323, %322 : vector<24x72xf32>
    %325 = arith.divf %323, %324 : vector<24x72xf32>
    %326 = vector.extract_strided_slice %319 {offsets = [0, 72], sizes = [24, 24], strides = [1, 1]} : vector<24x96xf32> to vector<24x24xf32>
    %327 = math.tanh %326 : vector<24x24xf32>
    %328 = vector.extract_strided_slice %325 {offsets = [0, 0], sizes = [8, 24], strides = [1, 1]} : vector<24x72xf32> to vector<8x24xf32>
    %329 = vector.extract_strided_slice %325 {offsets = [0, 24], sizes = [8, 24], strides = [1, 1]} : vector<24x72xf32> to vector<8x24xf32>
    %330 = vector.extract_strided_slice %327 {offsets = [0, 0], sizes = [8, 24], strides = [1, 1]} : vector<24x24xf32> to vector<8x24xf32>
    %331 = arith.mulf %329, %286 : vector<8x24xf32>
    %332 = arith.mulf %328, %330 : vector<8x24xf32>
    %333 = arith.addf %331, %332 : vector<8x24xf32>
    %334 = vector.extract_strided_slice %325 {offsets = [8, 0], sizes = [8, 24], strides = [1, 1]} : vector<24x72xf32> to vector<8x24xf32>
    %335 = vector.extract_strided_slice %325 {offsets = [8, 24], sizes = [8, 24], strides = [1, 1]} : vector<24x72xf32> to vector<8x24xf32>
    %336 = vector.extract_strided_slice %327 {offsets = [8, 0], sizes = [8, 24], strides = [1, 1]} : vector<24x24xf32> to vector<8x24xf32>
    %337 = arith.mulf %335, %292 : vector<8x24xf32>
    %338 = arith.mulf %334, %336 : vector<8x24xf32>
    %339 = arith.addf %337, %338 : vector<8x24xf32>
    %340 = vector.extract_strided_slice %325 {offsets = [16, 0], sizes = [8, 24], strides = [1, 1]} : vector<24x72xf32> to vector<8x24xf32>
    %341 = vector.extract_strided_slice %325 {offsets = [16, 24], sizes = [8, 24], strides = [1, 1]} : vector<24x72xf32> to vector<8x24xf32>
    %342 = vector.extract_strided_slice %327 {offsets = [16, 0], sizes = [8, 24], strides = [1, 1]} : vector<24x24xf32> to vector<8x24xf32>
    %343 = arith.mulf %341, %298 : vector<8x24xf32>
    %344 = arith.mulf %340, %342 : vector<8x24xf32>
    %345 = arith.addf %343, %344 : vector<8x24xf32>
    %346 = tpu.concatenate %333, %339, %345 in 0 : vector<8x24xf32>, vector<8x24xf32>, vector<8x24xf32> -> vector<24x24xf32>
    %347 = math.tanh %346 : vector<24x24xf32>
    %348 = vector.extract_strided_slice %325 {offsets = [0, 48], sizes = [8, 24], strides = [1, 1]} : vector<24x72xf32> to vector<8x24xf32>
    %349 = vector.extract_strided_slice %347 {offsets = [0, 0], sizes = [8, 24], strides = [1, 1]} : vector<24x24xf32> to vector<8x24xf32>
    %350 = arith.mulf %348, %349 : vector<8x24xf32>
    %351 = vector.extract_strided_slice %325 {offsets = [8, 48], sizes = [8, 24], strides = [1, 1]} : vector<24x72xf32> to vector<8x24xf32>
    %352 = vector.extract_strided_slice %347 {offsets = [8, 0], sizes = [8, 24], strides = [1, 1]} : vector<24x24xf32> to vector<8x24xf32>
    %353 = arith.mulf %351, %352 : vector<8x24xf32>
    %354 = vector.extract_strided_slice %325 {offsets = [16, 48], sizes = [8, 24], strides = [1, 1]} : vector<24x72xf32> to vector<8x24xf32>
    %355 = vector.extract_strided_slice %347 {offsets = [16, 0], sizes = [8, 24], strides = [1, 1]} : vector<24x24xf32> to vector<8x24xf32>
    %356 = arith.mulf %354, %355 : vector<8x24xf32>
    %357 = tpu.concatenate %350, %353 in 1 : vector<8x24xf32>, vector<8x24xf32> -> vector<8x48xf32>
    %cst_48 = arith.constant dense<0.000000e+00> : vector<8x96xf32>
    %358 = tpu.matmul %357, %4, %cst_48 {dimension_numbers = #tpu.dot_dimension_numbers<[1], [0], [0], [1], [0, 0, 1, 1], [], []>} : vector<8x48xf32>, vector<48x96xf32>, vector<8x96xf32> -> vector<8x96xf32>
    %359 = arith.addf %358, %12 : vector<8x96xf32>
    %360 = tpu.concatenate %353, %356 in 1 : vector<8x24xf32>, vector<8x24xf32> -> vector<8x48xf32>
    %cst_49 = arith.constant dense<0.000000e+00> : vector<8x96xf32>
    %361 = tpu.matmul %360, %6, %cst_49 {dimension_numbers = #tpu.dot_dimension_numbers<[1], [0], [0], [1], [0, 0, 1, 1], [], []>} : vector<8x48xf32>, vector<48x96xf32>, vector<8x96xf32> -> vector<8x96xf32>
    %362 = arith.addf %361, %16 : vector<8x96xf32>
    %363 = tpu.concatenate %359, %362 in 0 : vector<8x96xf32>, vector<8x96xf32> -> vector<16x96xf32>
    %364 = vector.extract_strided_slice %363 {offsets = [0, 0], sizes = [16, 72], strides = [1, 1]} : vector<16x96xf32> to vector<16x72xf32>
    %365 = arith.negf %364 : vector<16x72xf32>
    %366 = math.exp %365 : vector<16x72xf32>
    %cst_50 = arith.constant 1.000000e+00 : f32
    %367 = vector.broadcast %cst_50 : f32 to vector<16x72xf32>
    %368 = arith.addf %367, %366 : vector<16x72xf32>
    %369 = arith.divf %367, %368 : vector<16x72xf32>
    %370 = vector.extract_strided_slice %363 {offsets = [0, 72], sizes = [16, 24], strides = [1, 1]} : vector<16x96xf32> to vector<16x24xf32>
    %371 = math.tanh %370 : vector<16x24xf32>
    %372 = vector.extract_strided_slice %369 {offsets = [0, 0], sizes = [8, 24], strides = [1, 1]} : vector<16x72xf32> to vector<8x24xf32>
    %373 = vector.extract_strided_slice %369 {offsets = [0, 24], sizes = [8, 24], strides = [1, 1]} : vector<16x72xf32> to vector<8x24xf32>
    %374 = vector.extract_strided_slice %371 {offsets = [0, 0], sizes = [8, 24], strides = [1, 1]} : vector<16x24xf32> to vector<8x24xf32>
    %375 = arith.mulf %373, %339 : vector<8x24xf32>
    %376 = arith.mulf %372, %374 : vector<8x24xf32>
    %377 = arith.addf %375, %376 : vector<8x24xf32>
    %378 = vector.extract_strided_slice %369 {offsets = [8, 0], sizes = [8, 24], strides = [1, 1]} : vector<16x72xf32> to vector<8x24xf32>
    %379 = vector.extract_strided_slice %369 {offsets = [8, 24], sizes = [8, 24], strides = [1, 1]} : vector<16x72xf32> to vector<8x24xf32>
    %380 = vector.extract_strided_slice %371 {offsets = [8, 0], sizes = [8, 24], strides = [1, 1]} : vector<16x24xf32> to vector<8x24xf32>
    %381 = arith.mulf %379, %345 : vector<8x24xf32>
    %382 = arith.mulf %378, %380 : vector<8x24xf32>
    %383 = arith.addf %381, %382 : vector<8x24xf32>
    %384 = tpu.concatenate %377, %383 in 0 : vector<8x24xf32>, vector<8x24xf32> -> vector<16x24xf32>
    %385 = math.tanh %384 : vector<16x24xf32>
    %386 = vector.extract_strided_slice %369 {offsets = [0, 48], sizes = [8, 24], strides = [1, 1]} : vector<16x72xf32> to vector<8x24xf32>
    %387 = vector.extract_strided_slice %385 {offsets = [0, 0], sizes = [8, 24], strides = [1, 1]} : vector<16x24xf32> to vector<8x24xf32>
    %388 = arith.mulf %386, %387 : vector<8x24xf32>
    %389 = vector.extract_strided_slice %369 {offsets = [8, 48], sizes = [8, 24], strides = [1, 1]} : vector<16x72xf32> to vector<8x24xf32>
    %390 = vector.extract_strided_slice %385 {offsets = [8, 0], sizes = [8, 24], strides = [1, 1]} : vector<16x24xf32> to vector<8x24xf32>
    %391 = arith.mulf %389, %390 : vector<8x24xf32>
    %392 = tpu.concatenate %388, %391 in 1 : vector<8x24xf32>, vector<8x24xf32> -> vector<8x48xf32>
    %cst_51 = arith.constant dense<0.000000e+00> : vector<8x96xf32>
    %393 = tpu.matmul %392, %6, %cst_51 {dimension_numbers = #tpu.dot_dimension_numbers<[1], [0], [0], [1], [0, 0, 1, 1], [], []>} : vector<8x48xf32>, vector<48x96xf32>, vector<8x96xf32> -> vector<8x96xf32>
    %394 = arith.addf %393, %16 : vector<8x96xf32>
    %395 = vector.extract_strided_slice %394 {offsets = [0, 0], sizes = [8, 72], strides = [1, 1]} : vector<8x96xf32> to vector<8x72xf32>
    %396 = arith.negf %395 : vector<8x72xf32>
    %397 = math.exp %396 : vector<8x72xf32>
    %cst_52 = arith.constant 1.000000e+00 : f32
    %398 = vector.broadcast %cst_52 : f32 to vector<8x72xf32>
    %399 = arith.addf %398, %397 : vector<8x72xf32>
    %400 = arith.divf %398, %399 : vector<8x72xf32>
    %401 = vector.extract_strided_slice %394 {offsets = [0, 72], sizes = [8, 24], strides = [1, 1]} : vector<8x96xf32> to vector<8x24xf32>
    %402 = math.tanh %401 : vector<8x24xf32>
    %403 = vector.extract_strided_slice %400 {offsets = [0, 0], sizes = [8, 24], strides = [1, 1]} : vector<8x72xf32> to vector<8x24xf32>
    %404 = vector.extract_strided_slice %400 {offsets = [0, 24], sizes = [8, 24], strides = [1, 1]} : vector<8x72xf32> to vector<8x24xf32>
    %405 = arith.mulf %404, %383 : vector<8x24xf32>
    %406 = arith.mulf %403, %402 : vector<8x24xf32>
    %407 = arith.addf %405, %406 : vector<8x24xf32>
    %408 = math.tanh %407 : vector<8x24xf32>
    %409 = vector.extract_strided_slice %400 {offsets = [0, 48], sizes = [8, 24], strides = [1, 1]} : vector<8x72xf32> to vector<8x24xf32>
    %410 = arith.mulf %409, %408 : vector<8x24xf32>
    %411 = tpu.concatenate %121, %168, %215, %262, %309, %356, %391, %410 in 0 : vector<8x24xf32>, vector<8x24xf32>, vector<8x24xf32>, vector<8x24xf32>, vector<8x24xf32>, vector<8x24xf32>, vector<8x24xf32>, vector<8x24xf32> -> vector<64x24xf32>
    %c0_53 = arith.constant 0 : index
    %c0_54 = arith.constant 0 : index
    %412 = vector.load %arg5[%c0_53, %c0_54] : memref<24x24xf32, #tpu.memory_space<vmem>>, vector<24x24xf32>
    %cst_55 = arith.constant dense<0.000000e+00> : vector<64x24xf32>
    %413 = tpu.matmul %411, %412, %cst_55 {dimension_numbers = #tpu.dot_dimension_numbers<[1], [0], [0], [1], [0, 0, 1, 1], [], []>} : vector<64x24xf32>, vector<24x24xf32>, vector<64x24xf32> -> vector<64x24xf32>
    %c0_56 = arith.constant 0 : index
    %c0_57 = arith.constant 0 : index
    %414 = vector.load %arg6[%c0_56, %c0_57] : memref<1x24xf32, #tpu.memory_space<vmem>>, vector<1x24xf32>
    %415 = vector.broadcast %414 : vector<1x24xf32> to vector<64x24xf32>
    %416 = arith.addf %413, %415 : vector<64x24xf32>
    %417 = arith.negf %416 : vector<64x24xf32>
    %418 = math.exp %417 : vector<64x24xf32>
    %cst_58 = arith.constant 1.000000e+00 : f32
    %419 = vector.broadcast %cst_58 : f32 to vector<64x24xf32>
    %420 = arith.addf %419, %418 : vector<64x24xf32>
    %421 = arith.divf %419, %420 : vector<64x24xf32>
    %c0_59 = arith.constant 0 : index
    %c0_60 = arith.constant 0 : index
    %422 = vector.load %arg7[%c0_59, %c0_60] : memref<64x24xf32, #tpu.memory_space<vmem>>, vector<64x24xf32>
    tpu.vector_store %arg7[%c0_59, %c0_60], %421 {strides = array<i32>} : memref<64x24xf32, #tpu.memory_space<vmem>>, vector<64x24xf32>,
    return
  }
}

</mosaic_0001>

<llo_original>
// kernel: tg_supervisor_forward.1
$region0: #{tg_supervisor_forward.1}
  #allocation0 [shape = 'u32[]', space=smem, size = 0x4, offset = 0x4, fixed_abs, tag = 'smem constant byte address 0x4 - core index']
  #allocation1 [shape = 'u32[72,128]{1,0:T(1,128)}', space=vmem, size = 0x9000, scoped, tag = 'internal scratch']
  %s0 = inlined_call_operand.vmem [shape: f32[64,24], index: 0, kind: input, shape index: {}]
  %s1 = inlined_call_operand.vmem [shape: f32[24,96], index: 1, kind: input, shape index: {}]
  %s2 = inlined_call_operand.vmem [shape: f32[24,96], index: 2, kind: input, shape index: {}]
  %s3 = inlined_call_operand.vmem [shape: f32[2,48,96], index: 3, kind: input, shape index: {}]
  %s4 = inlined_call_operand.vmem [shape: f32[3,1,96], index: 4, kind: input, shape index: {}]
  %s5 = inlined_call_operand.vmem [shape: f32[24,24], index: 5, kind: input, shape index: {}]
  %s6 = inlined_call_operand.vmem [shape: f32[1,24], index: 6, kind: input, shape index: {}]
  %s7 = inlined_call_operand.vmem [shape: f32[64,24], index: 7, kind: output, shape index: {}]
  %s8 = sld [smem:[#allocation0]]
  $region38: #{tg_supervisor_forward.1} parent=0
    _
  %s10 = ssub.s32 1, %s8
  %s11 = scalar_select 0, %s10, %s8
  // Predicated region
  $region2: #{tg_supervisor_forward.1} parent=0 // pred_check
    _
  $region3: #{tg_supervisor_forward.1} parent=0 // pred_check_branch
    %13 = sbr.rel (0) target = $region5
  $region4: #{tg_supervisor_forward.1} parent=0 // pred_region
    _
  $region5: #{tg_supervisor_forward.1} parent=0 // pred_fallthru
    _
  // Predicated region
  $region6: #{tg_supervisor_forward.1} parent=0 // pred_check
    _
  $region7: #{tg_supervisor_forward.1} parent=0 // pred_check_branch
    %15 = sbr.rel (0) target = $region9
  $region8: #{tg_supervisor_forward.1} parent=0 // pred_region
    _
  $region9: #{tg_supervisor_forward.1} parent=0 // pred_fallthru
    _
  // Predicated region
  $region10: #{tg_supervisor_forward.1} parent=0 // pred_check
    _
  $region11: #{tg_supervisor_forward.1} parent=0 // pred_check_branch
    %17 = sbr.rel (0) target = $region13
  $region12: #{tg_supervisor_forward.1} parent=0 // pred_region
    _
  $region13: #{tg_supervisor_forward.1} parent=0 // pred_fallthru
    _
  // Predicated region
  $region14: #{tg_supervisor_forward.1} parent=0 // pred_check
    _
  $region15: #{tg_supervisor_forward.1} parent=0 // pred_check_branch
    %19 = sbr.rel (0) target = $region17
  $region16: #{tg_supervisor_forward.1} parent=0 // pred_region
    _
  $region17: #{tg_supervisor_forward.1} parent=0 // pred_fallthru
    _
  // Predicated region
  $region18: #{tg_supervisor_forward.1} parent=0 // pred_check
    _
  $region19: #{tg_supervisor_forward.1} parent=0 // pred_check_branch
    %21 = sbr.rel (0) target = $region21
  $region20: #{tg_supervisor_forward.1} parent=0 // pred_region
    _
  $region21: #{tg_supervisor_forward.1} parent=0 // pred_fallthru
    _
  // Predicated region
  $region22: #{tg_supervisor_forward.1} parent=0 // pred_check
    _
  $region23: #{tg_supervisor_forward.1} parent=0 // pred_check_branch
    %23 = sbr.rel (0) target = $region25
  $region24: #{tg_supervisor_forward.1} parent=0 // pred_region
    _
  $region25: #{tg_supervisor_forward.1} parent=0 // pred_fallthru
    _
  // Predicated region
  $region26: #{tg_supervisor_forward.1} parent=0 // pred_check
    _
  $region27: #{tg_supervisor_forward.1} parent=0 // pred_check_branch
    %25 = sbr.rel (0) target = $region29
  $region28: #{tg_supervisor_forward.1} parent=0 // pred_region
    _
  $region29: #{tg_supervisor_forward.1} parent=0 // pred_fallthru
    _
  %v26 = vld [vmem:[%s0] sm:$0xff]
  %v27 = vld [vmem:[%s0 + $0x8] sm:$0xff]
  %v28 = vld [vmem:[%s0 + $0x10] sm:$0xff]
  %v29 = vld [vmem:[%s0 + $0x18] sm:$0xff]
  %v30 = vld [vmem:[%s0 + $0x20] sm:$0xff]
  %v31 = vld [vmem:[%s0 + $0x28] sm:$0xff]
  %v32 = vld [vmem:[%s0 + $0x30] sm:$0xff]
  %v33 = vld [vmem:[%s0 + $0x38] sm:$0xff]
  %v34 = vld [vmem:[%s1] sm:$0xff]
  %v35 = vld [vmem:[%s1 + $0x8] sm:$0xff]
  %v36 = vld [vmem:[%s1 + $0x10] sm:$0xff]
  %v37 = vld [vmem:[%s2] sm:$0xff]
  %v38 = vld [vmem:[%s2 + $0x8] sm:$0xff]
  %v39 = vld [vmem:[%s2 + $0x10] sm:$0xff]
  %v40 = vld [vmem:[%s3] sm:$0xff]
  %v41 = vld [vmem:[%s3 + $0x8] sm:$0xff]
  %v42 = vld [vmem:[%s3 + $0x10] sm:$0xff]
  %v43 = vld [vmem:[%s3 + $0x18] sm:$0xff]
  %v44 = vld [vmem:[%s3 + $0x20] sm:$0xff]
  %v45 = vld [vmem:[%s3 + $0x28] sm:$0xff]
  %s46 = scalar_lea.vmem %s3, 48
  %v47 = vld [vmem:[%s46] sm:$0xff]
  %v48 = vld [vmem:[%s46 + $0x8] sm:$0xff]
  %v49 = vld [vmem:[%s46 + $0x10] sm:$0xff]
  %v50 = vld [vmem:[%s46 + $0x18] sm:$0xff]
  %v51 = vld [vmem:[%s46 + $0x20] sm:$0xff]
  %v52 = vld [vmem:[%s46 + $0x28] sm:$0xff]
  %v53 = vld [vmem:[%s4] sm:$0x1]
  %s54 = scalar_lea.vmem %s4, 1
  %v55 = vld [vmem:[%s54] sm:$0x1]
  %v57 = vperm.slane %v55, 0
  %s59 = scalar_lea.vmem %s4, 2
  %v60 = vld [vmem:[%s59] sm:$0x1]
  %v62 = vperm.slane %v60, 0
  %v65 = vperm.slane %v53, 0
  %vm67 = vcmask 195584
  %v69 = vsel %vm67, %v26, 0
  %v72 = vsel %vm67, %v27, 0
  %v75 = vsel %vm67, %v28, 0
  %v78 = vsel %vm67, %v29, 0
  %v81 = vsel %vm67, %v30, 0
  %v84 = vsel %vm67, %v31, 0
  %v87 = vsel %vm67, %v32, 0
  %v90 = vsel %vm67, %v33, 0
  %92 = vmatpush.msra.mxu0 0.0
  %93 = vmatpush.msra.mxu0 0.0
  %94 = vmatpush.msra.mxu0 0.0
  %95 = vmatpush.msra.mxu0 0.0
  %96 = vmatpush.msra.mxu0 0.0
  %97 = vmatpush.msra.mxu0 0.0
  %98 = vmatpush.msra.mxu0 0.0
  %99 = vmatpush.msra.mxu0 0.0
  %100 = vmatpush.msra.mxu0 0.0
  %101 = vmatpush.msra.mxu0 0.0
  %102 = vmatpush.msra.mxu0 0.0
  %103 = vmatpush.msra.mxu0 0.0
  %104 = vmatpush.msra.mxu0 0.0
  %105 = vmatpush.msra.mxu0 %v36
  %106 = vmatpush.msra.mxu0 %v35
  %107 = vmatpush.msra.mxu0 %v34
  %108 = vmatmul.f32.gmra.mxu0 %v69
  %v109 = vpop.f32.mrf.mxu0
  %v110 = vadd.f32 %v65, %v109
  %111 = vmatmul.f32.gmra.mxu0 %v72
  %v112 = vpop.f32.mrf.mxu0
  %v113 = vadd.f32 %v65, %v112
  %114 = vmatmul.f32.gmra.mxu0 %v75
  %v115 = vpop.f32.mrf.mxu0
  %v116 = vadd.f32 %v65, %v115
  %117 = vmatmul.f32.gmra.mxu0 %v78
  %v118 = vpop.f32.mrf.mxu0
  %v119 = vadd.f32 %v65, %v118
  %120 = vmatmul.f32.gmra.mxu0 %v81
  %v121 = vpop.f32.mrf.mxu0
  %v122 = vadd.f32 %v65, %v121
  %123 = vmatmul.f32.gmra.mxu0 %v84
  %v124 = vpop.f32.mrf.mxu0
  %v125 = vadd.f32 %v65, %v124
  %126 = vmatmul.f32.gmra.mxu0 %v87
  %v127 = vpop.f32.mrf.mxu0
  %v128 = vadd.f32 %v65, %v127
  %129 = vmatmul.f32.gmra.mxu0 %v90
  %v130 = vpop.f32.mrf.mxu0
  %v131 = vadd.f32 %v65, %v130
  %132 = vdwg.mxu0
  %v134 = vsel %vm67, 0.0, 0
  %136 = vmatpush.msra.mxu0 0.0
  %137 = vmatpush.msra.mxu0 0.0
  %138 = vmatpush.msra.mxu0 0.0
  %139 = vmatpush.msra.mxu0 0.0
  %140 = vmatpush.msra.mxu0 0.0
  %141 = vmatpush.msra.mxu0 0.0
  %142 = vmatpush.msra.mxu0 0.0
  %143 = vmatpush.msra.mxu0 0.0
  %144 = vmatpush.msra.mxu0 0.0
  %145 = vmatpush.msra.mxu0 0.0
  %146 = vmatpush.msra.mxu0 0.0
  %147 = vmatpush.msra.mxu0 0.0
  %148 = vmatpush.msra.mxu0 0.0
  %149 = vmatpush.msra.mxu0 %v39
  %150 = vmatpush.msra.mxu0 %v38
  %151 = vmatpush.msra.mxu0 %v37
  %152 = vmatmul.f32.gmra.mxu0 %v134
  %v153 = vpop.f32.mrf.mxu0
  %v154 = vadd.f32 0.0, %v153
  %155 = vdwg.mxu0
  %v156 = vadd.f32 %v110, %v154
  %v157 = vxor.u32 %v156, 2147483648
  %v158 = vmul.f32 %v157, 1.442695
  %v159 = vpow.pop %v158
  %v160 = vadd.f32 %v159, 1.0
  %v161 = vrcp.pop %v160
  %v162 = vmul.f32 %v160, %v161
  %v163 = vsub.f32 1.0, %v162
  %v164 = vmul.f32 %v161, %v163
  %v165 = vadd.f32 %v161, %v164
  %vm166 = vweird.f32 %v160
  %vm167 = vweird.f32 %v161
  %vm168 = vmor %vm166, %vm167
  %v169 = vsel %vm168, %v161, %v165
  %v170 = vand.u32 2147483647, %v160
  %vm171 = vcmp.eq.f32.partialorder %v170, 8.507059e+37
  %v172 = vand.u32 %v160, 2147483648
  %v173 = vor.u32 1.1754944e-38, %v172
  %v174 = vsel %vm171, %v173, %v169
  %v175 = vmul.f32 1.0, %v174
  %v176 = vtanh.pop %v156
  %v177 = vmul.f32 %v175, 0.0
  %179 = vrot.lane.b32.xlu0 %v176, 56
  %v180 = vpop.permute.xlu0 %179
  %v182 = vmul.f32 %v175, %v180
  %184 = vrot.lane.b32.xlu0 %v182, 24
  %v185 = vpop.permute.xlu0 %184
  %v187 = vadd.f32 %v177, %v185
  %v188 = vtanh.pop %v187
  %190 = vrot.lane.b32.xlu0 %v188, 24
  %v191 = vpop.permute.xlu0 %190
  %v193 = vmul.f32 %v175, %v191
  %195 = vrot.lane.b32.xlu0 %v193, 80
  %v196 = vpop.permute.xlu0 %195
  %v197 = vsel %vm67, %v196, 0
  %199 = vmatpush.msra.mxu0 0.0
  %200 = vmatpush.msra.mxu0 0.0
  %201 = vmatpush.msra.mxu0 0.0
  %202 = vmatpush.msra.mxu0 0.0
  %203 = vmatpush.msra.mxu0 0.0
  %204 = vmatpush.msra.mxu0 0.0
  %205 = vmatpush.msra.mxu0 0.0
  %206 = vmatpush.msra.mxu0 0.0
  %207 = vmatpush.msra.mxu0 0.0
  %208 = vmatpush.msra.mxu0 0.0
  %209 = vmatpush.msra.mxu0 0.0
  %210 = vmatpush.msra.mxu0 0.0
  %211 = vmatpush.msra.mxu0 0.0
  %212 = vmatpush.msra.mxu0 %v39
  %213 = vmatpush.msra.mxu0 %v38
  %214 = vmatpush.msra.mxu0 %v37
  %215 = vmatmul.f32.gmra.mxu0 %v197
  %v216 = vpop.f32.mrf.mxu0
  %v217 = vadd.f32 0.0, %v216
  %218 = vdwg.mxu0
  %v219 = vadd.f32 %v113, %v217
  %v221 = vsel %vm67, %v196, 0.0
  %vm222 = vcmask 392192
  %v224 = vsel %vm222, %v221, 0
  %226 = vmatpush.msra.mxu0 0.0
  %227 = vmatpush.msra.mxu0 0.0
  %228 = vmatpush.msra.mxu0 0.0
  %229 = vmatpush.msra.mxu0 0.0
  %230 = vmatpush.msra.mxu0 0.0
  %231 = vmatpush.msra.mxu0 0.0
  %232 = vmatpush.msra.mxu0 0.0
  %233 = vmatpush.msra.mxu0 0.0
  %234 = vmatpush.msra.mxu0 0.0
  %235 = vmatpush.msra.mxu0 0.0
  %236 = vmatpush.msra.mxu0 %v45
  %237 = vmatpush.msra.mxu0 %v44
  %238 = vmatpush.msra.mxu0 %v43
  %239 = vmatpush.msra.mxu0 %v42
  %240 = vmatpush.msra.mxu0 %v41
  %241 = vmatpush.msra.mxu0 %v40
  %242 = vmatmul.f32.gmra.mxu0 %v224
  %v243 = vpop.f32.mrf.mxu0
  %v244 = vadd.f32 %v57, %v243
  %245 = vdwg.mxu0
  %v246 = vxor.u32 %v219, 2147483648
  %v247 = vxor.u32 %v244, 2147483648
  %v248 = vmul.f32 %v246, 1.442695
  %v249 = vpow.pop %v248
  %v250 = vmul.f32 %v247, 1.442695
  %v251 = vpow.pop %v250
  %v252 = vadd.f32 %v249, 1.0
  %v253 = vadd.f32 %v251, 1.0
  %v254 = vrcp.pop %v252
  %v255 = vmul.f32 %v252, %v254
  %v256 = vsub.f32 1.0, %v255
  %v257 = vmul.f32 %v254, %v256
  %v258 = vadd.f32 %v254, %v257
  %vm259 = vweird.f32 %v252
  %vm260 = vweird.f32 %v254
  %vm261 = vmor %vm259, %vm260
  %v262 = vsel %vm261, %v254, %v258
  %v263 = vand.u32 2147483647, %v252
  %vm264 = vcmp.eq.f32.partialorder %v263, 8.507059e+37
  %v265 = vand.u32 %v252, 2147483648
  %v266 = vor.u32 1.1754944e-38, %v265
  %v267 = vsel %vm264, %v266, %v262
  %v268 = vmul.f32 1.0, %v267
  %v269 = vrcp.pop %v253
  %v270 = vmul.f32 %v253, %v269
  %v271 = vsub.f32 1.0, %v270
  %v272 = vmul.f32 %v269, %v271
  %v273 = vadd.f32 %v269, %v272
  %vm274 = vweird.f32 %v253
  %vm275 = vweird.f32 %v269
  %vm276 = vmor %vm274, %vm275
  %v277 = vsel %vm276, %v269, %v273
  %v278 = vand.u32 2147483647, %v253
  %vm279 = vcmp.eq.f32.partialorder %v278, 8.507059e+37
  %v280 = vand.u32 %v253, 2147483648
  %v281 = vor.u32 1.1754944e-38, %v280
  %v282 = vsel %vm279, %v281, %v277
  %v283 = vmul.f32 1.0, %v282
  %v284 = vtanh.pop %v219
  %v285 = vtanh.pop %v244
  %v286 = vmul.f32 %v268, %v187
  %288 = vrot.lane.b32.xlu0 %v284, 56
  %v289 = vpop.permute.xlu0 %288
  %v291 = vmul.f32 %v268, %v289
  %293 = vrot.lane.b32.xlu0 %v291, 24
  %v294 = vpop.permute.xlu0 %293
  %v296 = vadd.f32 %v286, %v294
  %v297 = vmul.f32 %v283, 0.0
  %299 = vrot.lane.b32.xlu0 %v285, 56
  %v300 = vpop.permute.xlu0 %299
  %v302 = vmul.f32 %v283, %v300
  %304 = vrot.lane.b32.xlu0 %v302, 24
  %v305 = vpop.permute.xlu0 %304
  %v307 = vadd.f32 %v297, %v305
  %v308 = vtanh.pop %v296
  %v309 = vtanh.pop %v307
  %311 = vrot.lane.b32.xlu0 %v308, 24
  %v312 = vpop.permute.xlu0 %311
  %v314 = vmul.f32 %v268, %v312
  %316 = vrot.lane.b32.xlu0 %v309, 24
  %v317 = vpop.permute.xlu0 %316
  %v319 = vmul.f32 %v283, %v317
  %321 = vrot.lane.b32.xlu0 %v314, 80
  %v322 = vpop.permute.xlu0 %321
  %v323 = vsel %vm67, %v322, 0
  %325 = vmatpush.msra.mxu0 0.0
  %326 = vmatpush.msra.mxu0 0.0
  %327 = vmatpush.msra.mxu0 0.0
  %328 = vmatpush.msra.mxu0 0.0
  %329 = vmatpush.msra.mxu0 0.0
  %330 = vmatpush.msra.mxu0 0.0
  %331 = vmatpush.msra.mxu0 0.0
  %332 = vmatpush.msra.mxu0 0.0
  %333 = vmatpush.msra.mxu0 0.0
  %334 = vmatpush.msra.mxu0 0.0
  %335 = vmatpush.msra.mxu0 0.0
  %336 = vmatpush.msra.mxu0 0.0
  %337 = vmatpush.msra.mxu0 0.0
  %338 = vmatpush.msra.mxu0 %v39
  %339 = vmatpush.msra.mxu0 %v38
  %340 = vmatpush.msra.mxu0 %v37
  %341 = vmatmul.f32.gmra.mxu0 %v323
  %v342 = vpop.f32.mrf.mxu0
  %v343 = vadd.f32 0.0, %v342
  %344 = vdwg.mxu0
  %v345 = vadd.f32 %v116, %v343
  %348 = vrot.lane.b32.xlu0 %v319, 104
  %v349 = vpop.permute.xlu0 %348
  %v351 = vsel %vm67, %v322, %v349
  %v353 = vsel %vm222, %v351, 0
  %355 = vmatpush.msra.mxu0 0.0
  %356 = vmatpush.msra.mxu0 0.0
  %357 = vmatpush.msra.mxu0 0.0
  %358 = vmatpush.msra.mxu0 0.0
  %359 = vmatpush.msra.mxu0 0.0
  %360 = vmatpush.msra.mxu0 0.0
  %361 = vmatpush.msra.mxu0 0.0
  %362 = vmatpush.msra.mxu0 0.0
  %363 = vmatpush.msra.mxu0 0.0
  %364 = vmatpush.msra.mxu0 0.0
  %365 = vmatpush.msra.mxu0 %v45
  %366 = vmatpush.msra.mxu0 %v44
  %367 = vmatpush.msra.mxu0 %v43
  %368 = vmatpush.msra.mxu0 %v42
  %369 = vmatpush.msra.mxu0 %v41
  %370 = vmatpush.msra.mxu0 %v40
  %371 = vmatmul.f32.gmra.mxu0 %v353
  %v372 = vpop.f32.mrf.mxu0
  %v373 = vadd.f32 %v57, %v372
  %374 = vdwg.mxu0
  %375 = vrot.lane.b32.xlu0 %v319, 80
  %v376 = vpop.permute.xlu0 %375
  %v378 = vsel %vm67, %v376, 0.0
  %v380 = vsel %vm222, %v378, 0
  %382 = vmatpush.msra.mxu0 0.0
  %383 = vmatpush.msra.mxu0 0.0
  %384 = vmatpush.msra.mxu0 0.0
  %385 = vmatpush.msra.mxu0 0.0
  %386 = vmatpush.msra.mxu0 0.0
  %387 = vmatpush.msra.mxu0 0.0
  %388 = vmatpush.msra.mxu0 0.0
  %389 = vmatpush.msra.mxu0 0.0
  %390 = vmatpush.msra.mxu0 0.0
  %391 = vmatpush.msra.mxu0 0.0
  %392 = vmatpush.msra.mxu0 %v52
  %393 = vmatpush.msra.mxu0 %v51
  %394 = vmatpush.msra.mxu0 %v50
  %395 = vmatpush.msra.mxu0 %v49
  %396 = vmatpush.msra.mxu0 %v48
  %397 = vmatpush.msra.mxu0 %v47
  %398 = vmatmul.f32.gmra.mxu0 %v380
  %v399 = vpop.f32.mrf.mxu0
  %v400 = vadd.f32 %v62, %v399
  %401 = vdwg.mxu0
  %v402 = vxor.u32 %v345, 2147483648
  %v403 = vxor.u32 %v373, 2147483648
  %v404 = vxor.u32 %v400, 2147483648
  %v405 = vmul.f32 %v402, 1.442695
  %v406 = vpow.pop %v405
  %v407 = vmul.f32 %v403, 1.442695
  %v408 = vpow.pop %v407
  %v409 = vmul.f32 %v404, 1.442695
  %v410 = vpow.pop %v409
  %v411 = vadd.f32 %v406, 1.0
  %v412 = vadd.f32 %v408, 1.0
  %v413 = vadd.f32 %v410, 1.0
  %v414 = vrcp.pop %v411
  %v415 = vmul.f32 %v411, %v414
  %v416 = vsub.f32 1.0, %v415
  %v417 = vmul.f32 %v414, %v416
  %v418 = vadd.f32 %v414, %v417
  %vm419 = vweird.f32 %v411
  %vm420 = vweird.f32 %v414
  %vm421 = vmor %vm419, %vm420
  %v422 = vsel %vm421, %v414, %v418
  %v423 = vand.u32 2147483647, %v411
  %vm424 = vcmp.eq.f32.partialorder %v423, 8.507059e+37
  %v425 = vand.u32 %v411, 2147483648
  %v426 = vor.u32 1.1754944e-38, %v425
  %v427 = vsel %vm424, %v426, %v422
  %v428 = vmul.f32 1.0, %v427
  %v429 = vrcp.pop %v412
  %v430 = vmul.f32 %v412, %v429
  %v431 = vsub.f32 1.0, %v430
  %v432 = vmul.f32 %v429, %v431
  %v433 = vadd.f32 %v429, %v432
  %vm434 = vweird.f32 %v412
  %vm435 = vweird.f32 %v429
  %vm436 = vmor %vm434, %vm435
  %v437 = vsel %vm436, %v429, %v433
  %v438 = vand.u32 2147483647, %v412
  %vm439 = vcmp.eq.f32.partialorder %v438, 8.507059e+37
  %v440 = vand.u32 %v412, 2147483648
  %v441 = vor.u32 1.1754944e-38, %v440
  %v442 = vsel %vm439, %v441, %v437
  %v443 = vmul.f32 1.0, %v442
  %v444 = vrcp.pop %v413
  %v445 = vmul.f32 %v413, %v444
  %v446 = vsub.f32 1.0, %v445
  %v447 = vmul.f32 %v444, %v446
  %v448 = vadd.f32 %v444, %v447
  %vm449 = vweird.f32 %v413
  %vm450 = vweird.f32 %v444
  %vm451 = vmor %vm449, %vm450
  %v452 = vsel %vm451, %v444, %v448
  %v453 = vand.u32 2147483647, %v413
  %vm454 = vcmp.eq.f32.partialorder %v453, 8.507059e+37
  %v455 = vand.u32 %v413, 2147483648
  %v456 = vor.u32 1.1754944e-38, %v455
  %v457 = vsel %vm454, %v456, %v452
  %v458 = vmul.f32 1.0, %v457
  %v459 = vtanh.pop %v345
  %v460 = vtanh.pop %v373
  %v461 = vtanh.pop %v400
  %v462 = vmul.f32 %v428, %v296
  %464 = vrot.lane.b32.xlu0 %v459, 56
  %v465 = vpop.permute.xlu0 %464
  %v467 = vmul.f32 %v428, %v465
  %469 = vrot.lane.b32.xlu0 %v467, 24
  %v470 = vpop.permute.xlu0 %469
  %v472 = vadd.f32 %v462, %v470
  %v473 = vmul.f32 %v443, %v307
  %475 = vrot.lane.b32.xlu0 %v460, 56
  %v476 = vpop.permute.xlu0 %475
  %v478 = vmul.f32 %v443, %v476
  %480 = vrot.lane.b32.xlu0 %v478, 24
  %v481 = vpop.permute.xlu0 %480
  %v483 = vadd.f32 %v473, %v481
  %v484 = vmul.f32 %v458, 0.0
  %486 = vrot.lane.b32.xlu0 %v461, 56
  %v487 = vpop.permute.xlu0 %486
  %v489 = vmul.f32 %v458, %v487
  %491 = vrot.lane.b32.xlu0 %v489, 24
  %v492 = vpop.permute.xlu0 %491
  %v494 = vadd.f32 %v484, %v492
  %v495 = vtanh.pop %v472
  %v496 = vtanh.pop %v483
  %v497 = vtanh.pop %v494
  %499 = vrot.lane.b32.xlu0 %v495, 24
  %v500 = vpop.permute.xlu0 %499
  %v502 = vmul.f32 %v428, %v500
  %504 = vrot.lane.b32.xlu0 %v496, 24
  %v505 = vpop.permute.xlu0 %504
  %v507 = vmul.f32 %v443, %v505
  %509 = vrot.lane.b32.xlu0 %v497, 24
  %v510 = vpop.permute.xlu0 %509
  %v512 = vmul.f32 %v458, %v510
  %514 = vrot.lane.b32.xlu0 %v502, 80
  %v515 = vpop.permute.xlu0 %514
  %v516 = vsel %vm67, %v515, 0
  %518 = vmatpush.msra.mxu0 0.0
  %519 = vmatpush.msra.mxu0 0.0
  %520 = vmatpush.msra.mxu0 0.0
  %521 = vmatpush.msra.mxu0 0.0
  %522 = vmatpush.msra.mxu0 0.0
  %523 = vmatpush.msra.mxu0 0.0
  %524 = vmatpush.msra.mxu0 0.0
  %525 = vmatpush.msra.mxu0 0.0
  %526 = vmatpush.msra.mxu0 0.0
  %527 = vmatpush.msra.mxu0 0.0
  %528 = vmatpush.msra.mxu0 0.0
  %529 = vmatpush.msra.mxu0 0.0
  %530 = vmatpush.msra.mxu0 0.0
  %531 = vmatpush.msra.mxu0 %v39
  %532 = vmatpush.msra.mxu0 %v38
  %533 = vmatpush.msra.mxu0 %v37
  %534 = vmatmul.f32.gmra.mxu0 %v516
  %v535 = vpop.f32.mrf.mxu0
  %v536 = vadd.f32 0.0, %v535
  %537 = vdwg.mxu0
  %v538 = vadd.f32 %v119, %v536
  %541 = vrot.lane.b32.xlu0 %v507, 104
  %v542 = vpop.permute.xlu0 %541
  %v544 = vsel %vm67, %v515, %v542
  %v546 = vsel %vm222, %v544, 0
  %548 = vmatpush.msra.mxu0 0.0
  %549 = vmatpush.msra.mxu0 0.0
  %550 = vmatpush.msra.mxu0 0.0
  %551 = vmatpush.msra.mxu0 0.0
  %552 = vmatpush.msra.mxu0 0.0
  %553 = vmatpush.msra.mxu0 0.0
  %554 = vmatpush.msra.mxu0 0.0
  %555 = vmatpush.msra.mxu0 0.0
  %556 = vmatpush.msra.mxu0 0.0
  %557 = vmatpush.msra.mxu0 0.0
  %558 = vmatpush.msra.mxu0 %v45
  %559 = vmatpush.msra.mxu0 %v44
  %560 = vmatpush.msra.mxu0 %v43
  %561 = vmatpush.msra.mxu0 %v42
  %562 = vmatpush.msra.mxu0 %v41
  %563 = vmatpush.msra.mxu0 %v40
  %564 = vmatmul.f32.gmra.mxu0 %v546
  %v565 = vpop.f32.mrf.mxu0
  %v566 = vadd.f32 %v57, %v565
  %567 = vdwg.mxu0
  %568 = vrot.lane.b32.xlu0 %v507, 80
  %v569 = vpop.permute.xlu0 %568
  %572 = vrot.lane.b32.xlu0 %v512, 104
  %v573 = vpop.permute.xlu0 %572
  %v575 = vsel %vm67, %v569, %v573
  %v577 = vsel %vm222, %v575, 0
  %579 = vmatpush.msra.mxu0 0.0
  %580 = vmatpush.msra.mxu0 0.0
  %581 = vmatpush.msra.mxu0 0.0
  %582 = vmatpush.msra.mxu0 0.0
  %583 = vmatpush.msra.mxu0 0.0
  %584 = vmatpush.msra.mxu0 0.0
  %585 = vmatpush.msra.mxu0 0.0
  %586 = vmatpush.msra.mxu0 0.0
  %587 = vmatpush.msra.mxu0 0.0
  %588 = vmatpush.msra.mxu0 0.0
  %589 = vmatpush.msra.mxu0 %v52
  %590 = vmatpush.msra.mxu0 %v51
  %591 = vmatpush.msra.mxu0 %v50
  %592 = vmatpush.msra.mxu0 %v49
  %593 = vmatpush.msra.mxu0 %v48
  %594 = vmatpush.msra.mxu0 %v47
  %595 = vmatmul.f32.gmra.mxu0 %v577
  %v596 = vpop.f32.mrf.mxu0
  %v597 = vadd.f32 %v62, %v596
  %598 = vdwg.mxu0
  %v599 = vxor.u32 %v538, 2147483648
  %v600 = vxor.u32 %v566, 2147483648
  %v601 = vxor.u32 %v597, 2147483648
  %v602 = vmul.f32 %v599, 1.442695
  %v603 = vpow.pop %v602
  %v604 = vmul.f32 %v600, 1.442695
  %v605 = vpow.pop %v604
  %v606 = vmul.f32 %v601, 1.442695
  %v607 = vpow.pop %v606
  %v608 = vadd.f32 %v603, 1.0
  %v609 = vadd.f32 %v605, 1.0
  %v610 = vadd.f32 %v607, 1.0
  %v611 = vrcp.pop %v608
  %v612 = vmul.f32 %v608, %v611
  %v613 = vsub.f32 1.0, %v612
  %v614 = vmul.f32 %v611, %v613
  %v615 = vadd.f32 %v611, %v614
  %vm616 = vweird.f32 %v608
  %vm617 = vweird.f32 %v611
  %vm618 = vmor %vm616, %vm617
  %v619 = vsel %vm618, %v611, %v615
  %v620 = vand.u32 2147483647, %v608
  %vm621 = vcmp.eq.f32.partialorder %v620, 8.507059e+37
  %v622 = vand.u32 %v608, 2147483648
  %v623 = vor.u32 1.1754944e-38, %v622
  %v624 = vsel %vm621, %v623, %v619
  %v625 = vmul.f32 1.0, %v624
  %v626 = vrcp.pop %v609
  %v627 = vmul.f32 %v609, %v626
  %v628 = vsub.f32 1.0, %v627
  %v629 = vmul.f32 %v626, %v628
  %v630 = vadd.f32 %v626, %v629
  %vm631 = vweird.f32 %v609
  %vm632 = vweird.f32 %v626
  %vm633 = vmor %vm631, %vm632
  %v634 = vsel %vm633, %v626, %v630
  %v635 = vand.u32 2147483647, %v609
  %vm636 = vcmp.eq.f32.partialorder %v635, 8.507059e+37
  %v637 = vand.u32 %v609, 2147483648
  %v638 = vor.u32 1.1754944e-38, %v637
  %v639 = vsel %vm636, %v638, %v634
  %v640 = vmul.f32 1.0, %v639
  %v641 = vrcp.pop %v610
  %v642 = vmul.f32 %v610, %v641
  %v643 = vsub.f32 1.0, %v642
  %v644 = vmul.f32 %v641, %v643
  %v645 = vadd.f32 %v641, %v644
  %vm646 = vweird.f32 %v610
  %vm647 = vweird.f32 %v641
  %vm648 = vmor %vm646, %vm647
  %v649 = vsel %vm648, %v641, %v645
  %v650 = vand.u32 2147483647, %v610
  %vm651 = vcmp.eq.f32.partialorder %v650, 8.507059e+37
  %v652 = vand.u32 %v610, 2147483648
  %v653 = vor.u32 1.1754944e-38, %v652
  %v654 = vsel %vm651, %v653, %v649
  %v655 = vmul.f32 1.0, %v654
  %v656 = vtanh.pop %v538
  %v657 = vtanh.pop %v566
  %v658 = vtanh.pop %v597
  %v659 = vmul.f32 %v625, %v472
  %661 = vrot.lane.b32.xlu0 %v656, 56
  %v662 = vpop.permute.xlu0 %661
  %v664 = vmul.f32 %v625, %v662
  %666 = vrot.lane.b32.xlu0 %v664, 24
  %v667 = vpop.permute.xlu0 %666
  %v669 = vadd.f32 %v659, %v667
  %v670 = vmul.f32 %v640, %v483
  %672 = vrot.lane.b32.xlu0 %v657, 56
  %v673 = vpop.permute.xlu0 %672
  %v675 = vmul.f32 %v640, %v673
  %677 = vrot.lane.b32.xlu0 %v675, 24
  %v678 = vpop.permute.xlu0 %677
  %v680 = vadd.f32 %v670, %v678
  %v681 = vmul.f32 %v655, %v494
  %683 = vrot.lane.b32.xlu0 %v658, 56
  %v684 = vpop.permute.xlu0 %683
  %v686 = vmul.f32 %v655, %v684
  %688 = vrot.lane.b32.xlu0 %v686, 24
  %v689 = vpop.permute.xlu0 %688
  %v691 = vadd.f32 %v681, %v689
  %v692 = vtanh.pop %v669
  %v693 = vtanh.pop %v680
  %v694 = vtanh.pop %v691
  %696 = vrot.lane.b32.xlu0 %v692, 24
  %v697 = vpop.permute.xlu0 %696
  %v699 = vmul.f32 %v625, %v697
  %701 = vrot.lane.b32.xlu0 %v693, 24
  %v702 = vpop.permute.xlu0 %701
  %v704 = vmul.f32 %v640, %v702
  %706 = vrot.lane.b32.xlu0 %v694, 24
  %v707 = vpop.permute.xlu0 %706
  %v709 = vmul.f32 %v655, %v707
  %711 = vrot.lane.b32.xlu0 %v699, 80
  %v712 = vpop.permute.xlu0 %711
  %v713 = vsel %vm67, %v712, 0
  %715 = vmatpush.msra.mxu0 0.0
  %716 = vmatpush.msra.mxu0 0.0
  %717 = vmatpush.msra.mxu0 0.0
  %718 = vmatpush.msra.mxu0 0.0
  %719 = vmatpush.msra.mxu0 0.0
  %720 = vmatpush.msra.mxu0 0.0
  %721 = vmatpush.msra.mxu0 0.0
  %722 = vmatpush.msra.mxu0 0.0
  %723 = vmatpush.msra.mxu0 0.0
  %724 = vmatpush.msra.mxu0 0.0
  %725 = vmatpush.msra.mxu0 0.0
  %726 = vmatpush.msra.mxu0 0.0
  %727 = vmatpush.msra.mxu0 0.0
  %728 = vmatpush.msra.mxu0 %v39
  %729 = vmatpush.msra.mxu0 %v38
  %730 = vmatpush.msra.mxu0 %v37
  %731 = vmatmul.f32.gmra.mxu0 %v713
  %v732 = vpop.f32.mrf.mxu0
  %v733 = vadd.f32 0.0, %v732
  %734 = vdwg.mxu0
  %v735 = vadd.f32 %v122, %v733
  %738 = vrot.lane.b32.xlu0 %v704, 104
  %v739 = vpop.permute.xlu0 %738
  %v741 = vsel %vm67, %v712, %v739
  %v743 = vsel %vm222, %v741, 0
  %745 = vmatpush.msra.mxu0 0.0
  %746 = vmatpush.msra.mxu0 0.0
  %747 = vmatpush.msra.mxu0 0.0
  %748 = vmatpush.msra.mxu0 0.0
  %749 = vmatpush.msra.mxu0 0.0
  %750 = vmatpush.msra.mxu0 0.0
  %751 = vmatpush.msra.mxu0 0.0
  %752 = vmatpush.msra.mxu0 0.0
  %753 = vmatpush.msra.mxu0 0.0
  %754 = vmatpush.msra.mxu0 0.0
  %755 = vmatpush.msra.mxu0 %v45
  %756 = vmatpush.msra.mxu0 %v44
  %757 = vmatpush.msra.mxu0 %v43
  %758 = vmatpush.msra.mxu0 %v42
  %759 = vmatpush.msra.mxu0 %v41
  %760 = vmatpush.msra.mxu0 %v40
  %761 = vmatmul.f32.gmra.mxu0 %v743
  %v762 = vpop.f32.mrf.mxu0
  %v763 = vadd.f32 %v57, %v762
  %764 = vdwg.mxu0
  %765 = vrot.lane.b32.xlu0 %v704, 80
  %v766 = vpop.permute.xlu0 %765
  %769 = vrot.lane.b32.xlu0 %v709, 104
  %v770 = vpop.permute.xlu0 %769
  %v772 = vsel %vm67, %v766, %v770
  %v774 = vsel %vm222, %v772, 0
  %776 = vmatpush.msra.mxu0 0.0
  %777 = vmatpush.msra.mxu0 0.0
  %778 = vmatpush.msra.mxu0 0.0
  %779 = vmatpush.msra.mxu0 0.0
  %780 = vmatpush.msra.mxu0 0.0
  %781 = vmatpush.msra.mxu0 0.0
  %782 = vmatpush.msra.mxu0 0.0
  %783 = vmatpush.msra.mxu0 0.0
  %784 = vmatpush.msra.mxu0 0.0
  %785 = vmatpush.msra.mxu0 0.0
  %786 = vmatpush.msra.mxu0 %v52
  %787 = vmatpush.msra.mxu0 %v51
  %788 = vmatpush.msra.mxu0 %v50
  %789 = vmatpush.msra.mxu0 %v49
  %790 = vmatpush.msra.mxu0 %v48
  %791 = vmatpush.msra.mxu0 %v47
  %792 = vmatmul.f32.gmra.mxu0 %v774
  %v793 = vpop.f32.mrf.mxu0
  %v794 = vadd.f32 %v62, %v793
  %795 = vdwg.mxu0
  %v796 = vxor.u32 %v735, 2147483648
  %v797 = vxor.u32 %v763, 2147483648
  %v798 = vxor.u32 %v794, 2147483648
  %v799 = vmul.f32 %v796, 1.442695
  %v800 = vpow.pop %v799
  %v801 = vmul.f32 %v797, 1.442695
  %v802 = vpow.pop %v801
  %v803 = vmul.f32 %v798, 1.442695
  %v804 = vpow.pop %v803
  %v805 = vadd.f32 %v800, 1.0
  %v806 = vadd.f32 %v802, 1.0
  %v807 = vadd.f32 %v804, 1.0
  %v808 = vrcp.pop %v805
  %v809 = vmul.f32 %v805, %v808
  %v810 = vsub.f32 1.0, %v809
  %v811 = vmul.f32 %v808, %v810
  %v812 = vadd.f32 %v808, %v811
  %vm813 = vweird.f32 %v805
  %vm814 = vweird.f32 %v808
  %vm815 = vmor %vm813, %vm814
  %v816 = vsel %vm815, %v808, %v812
  %v817 = vand.u32 2147483647, %v805
  %vm818 = vcmp.eq.f32.partialorder %v817, 8.507059e+37
  %v819 = vand.u32 %v805, 2147483648
  %v820 = vor.u32 1.1754944e-38, %v819
  %v821 = vsel %vm818, %v820, %v816
  %v822 = vmul.f32 1.0, %v821
  %v823 = vrcp.pop %v806
  %v824 = vmul.f32 %v806, %v823
  %v825 = vsub.f32 1.0, %v824
  %v826 = vmul.f32 %v823, %v825
  %v827 = vadd.f32 %v823, %v826
  %vm828 = vweird.f32 %v806
  %vm829 = vweird.f32 %v823
  %vm830 = vmor %vm828, %vm829
  %v831 = vsel %vm830, %v823, %v827
  %v832 = vand.u32 2147483647, %v806
  %vm833 = vcmp.eq.f32.partialorder %v832, 8.507059e+37
  %v834 = vand.u32 %v806, 2147483648
  %v835 = vor.u32 1.1754944e-38, %v834
  %v836 = vsel %vm833, %v835, %v831
  %v837 = vmul.f32 1.0, %v836
  %v838 = vrcp.pop %v807
  %v839 = vmul.f32 %v807, %v838
  %v840 = vsub.f32 1.0, %v839
  %v841 = vmul.f32 %v838, %v840
  %v842 = vadd.f32 %v838, %v841
  %vm843 = vweird.f32 %v807
  %vm844 = vweird.f32 %v838
  %vm845 = vmor %vm843, %vm844
  %v846 = vsel %vm845, %v838, %v842
  %v847 = vand.u32 2147483647, %v807
  %vm848 = vcmp.eq.f32.partialorder %v847, 8.507059e+37
  %v849 = vand.u32 %v807, 2147483648
  %v850 = vor.u32 1.1754944e-38, %v849
  %v851 = vsel %vm848, %v850, %v846
  %v852 = vmul.f32 1.0, %v851
  %v853 = vtanh.pop %v735
  %v854 = vtanh.pop %v763
  %v855 = vtanh.pop %v794
  %v856 = vmul.f32 %v822, %v669
  %858 = vrot.lane.b32.xlu0 %v853, 56
  %v859 = vpop.permute.xlu0 %858
  %v861 = vmul.f32 %v822, %v859
  %863 = vrot.lane.b32.xlu0 %v861, 24
  %v864 = vpop.permute.xlu0 %863
  %v866 = vadd.f32 %v856, %v864
  %v867 = vmul.f32 %v837, %v680
  %869 = vrot.lane.b32.xlu0 %v854, 56
  %v870 = vpop.permute.xlu0 %869
  %v872 = vmul.f32 %v837, %v870
  %874 = vrot.lane.b32.xlu0 %v872, 24
  %v875 = vpop.permute.xlu0 %874
  %v877 = vadd.f32 %v867, %v875
  %v878 = vmul.f32 %v852, %v691
  %880 = vrot.lane.b32.xlu0 %v855, 56
  %v881 = vpop.permute.xlu0 %880
  %v883 = vmul.f32 %v852, %v881
  %885 = vrot.lane.b32.xlu0 %v883, 24
  %v886 = vpop.permute.xlu0 %885
  %v888 = vadd.f32 %v878, %v886
  %v889 = vtanh.pop %v866
  %v890 = vtanh.pop %v877
  %v891 = vtanh.pop %v888
  %893 = vrot.lane.b32.xlu0 %v889, 24
  %v894 = vpop.permute.xlu0 %893
  %v896 = vmul.f32 %v822, %v894
  %898 = vrot.lane.b32.xlu0 %v890, 24
  %v899 = vpop.permute.xlu0 %898
  %v901 = vmul.f32 %v837, %v899
  %903 = vrot.lane.b32.xlu0 %v891, 24
  %v904 = vpop.permute.xlu0 %903
  %v906 = vmul.f32 %v852, %v904
  %908 = vrot.lane.b32.xlu0 %v896, 80
  %v909 = vpop.permute.xlu0 %908
  %v910 = vsel %vm67, %v909, 0
  %912 = vmatpush.msra.mxu0 0.0
  %913 = vmatpush.msra.mxu0 0.0
  %914 = vmatpush.msra.mxu0 0.0
  %915 = vmatpush.msra.mxu0 0.0
  %916 = vmatpush.msra.mxu0 0.0
  %917 = vmatpush.msra.mxu0 0.0
  %918 = vmatpush.msra.mxu0 0.0
  %919 = vmatpush.msra.mxu0 0.0
  %920 = vmatpush.msra.mxu0 0.0
  %921 = vmatpush.msra.mxu0 0.0
  %922 = vmatpush.msra.mxu0 0.0
  %923 = vmatpush.msra.mxu0 0.0
  %924 = vmatpush.msra.mxu0 0.0
  %925 = vmatpush.msra.mxu0 %v39
  %926 = vmatpush.msra.mxu0 %v38
  %927 = vmatpush.msra.mxu0 %v37
  %928 = vmatmul.f32.gmra.mxu0 %v910
  %v929 = vpop.f32.mrf.mxu0
  %v930 = vadd.f32 0.0, %v929
  %931 = vdwg.mxu0
  %v932 = vadd.f32 %v125, %v930
  %935 = vrot.lane.b32.xlu0 %v901, 104
  %v936 = vpop.permute.xlu0 %935
  %v938 = vsel %vm67, %v909, %v936
  %v940 = vsel %vm222, %v938, 0
  %942 = vmatpush.msra.mxu0 0.0
  %943 = vmatpush.msra.mxu0 0.0
  %944 = vmatpush.msra.mxu0 0.0
  %945 = vmatpush.msra.mxu0 0.0
  %946 = vmatpush.msra.mxu0 0.0
  %947 = vmatpush.msra.mxu0 0.0
  %948 = vmatpush.msra.mxu0 0.0
  %949 = vmatpush.msra.mxu0 0.0
  %950 = vmatpush.msra.mxu0 0.0
  %951 = vmatpush.msra.mxu0 0.0
  %952 = vmatpush.msra.mxu0 %v45
  %953 = vmatpush.msra.mxu0 %v44
  %954 = vmatpush.msra.mxu0 %v43
  %955 = vmatpush.msra.mxu0 %v42
  %956 = vmatpush.msra.mxu0 %v41
  %957 = vmatpush.msra.mxu0 %v40
  %958 = vmatmul.f32.gmra.mxu0 %v940
  %v959 = vpop.f32.mrf.mxu0
  %v960 = vadd.f32 %v57, %v959
  %961 = vdwg.mxu0
  %962 = vrot.lane.b32.xlu0 %v901, 80
  %v963 = vpop.permute.xlu0 %962
  %966 = vrot.lane.b32.xlu0 %v906, 104
  %v967 = vpop.permute.xlu0 %966
  %v969 = vsel %vm67, %v963, %v967
  %v971 = vsel %vm222, %v969, 0
  %973 = vmatpush.msra.mxu0 0.0
  %974 = vmatpush.msra.mxu0 0.0
  %975 = vmatpush.msra.mxu0 0.0
  %976 = vmatpush.msra.mxu0 0.0
  %977 = vmatpush.msra.mxu0 0.0
  %978 = vmatpush.msra.mxu0 0.0
  %979 = vmatpush.msra.mxu0 0.0
  %980 = vmatpush.msra.mxu0 0.0
  %981 = vmatpush.msra.mxu0 0.0
  %982 = vmatpush.msra.mxu0 0.0
  %983 = vmatpush.msra.mxu0 %v52
  %984 = vmatpush.msra.mxu0 %v51
  %985 = vmatpush.msra.mxu0 %v50
  %986 = vmatpush.msra.mxu0 %v49
  %987 = vmatpush.msra.mxu0 %v48
  %988 = vmatpush.msra.mxu0 %v47
  %989 = vmatmul.f32.gmra.mxu0 %v971
  %v990 = vpop.f32.mrf.mxu0
  %v991 = vadd.f32 %v62, %v990
  %992 = vdwg.mxu0
  %v993 = vxor.u32 %v932, 2147483648
  %v994 = vxor.u32 %v960, 2147483648
  %v995 = vxor.u32 %v991, 2147483648
  %v996 = vmul.f32 %v993, 1.442695
  %v997 = vpow.pop %v996
  %v998 = vmul.f32 %v994, 1.442695
  %v999 = vpow.pop %v998
  %v1000 = vmul.f32 %v995, 1.442695
  %v1001 = vpow.pop %v1000
  %v1002 = vadd.f32 %v997, 1.0
  %v1003 = vadd.f32 %v999, 1.0
  %v1004 = vadd.f32 %v1001, 1.0
  %v1005 = vrcp.pop %v1002
  %v1006 = vmul.f32 %v1002, %v1005
  %v1007 = vsub.f32 1.0, %v1006
  %v1008 = vmul.f32 %v1005, %v1007
  %v1009 = vadd.f32 %v1005, %v1008
  %vm1010 = vweird.f32 %v1002
  %vm1011 = vweird.f32 %v1005
  %vm1012 = vmor %vm1010, %vm1011
  %v1013 = vsel %vm1012, %v1005, %v1009
  %v1014 = vand.u32 2147483647, %v1002
  %vm1015 = vcmp.eq.f32.partialorder %v1014, 8.507059e+37
  %v1016 = vand.u32 %v1002, 2147483648
  %v1017 = vor.u32 1.1754944e-38, %v1016
  %v1018 = vsel %vm1015, %v1017, %v1013
  %v1019 = vmul.f32 1.0, %v1018
  %v1020 = vrcp.pop %v1003
  %v1021 = vmul.f32 %v1003, %v1020
  %v1022 = vsub.f32 1.0, %v1021
  %v1023 = vmul.f32 %v1020, %v1022
  %v1024 = vadd.f32 %v1020, %v1023
  %vm1025 = vweird.f32 %v1003
  %vm1026 = vweird.f32 %v1020
  %vm1027 = vmor %vm1025, %vm1026
  %v1028 = vsel %vm1027, %v1020, %v1024
  %v1029 = vand.u32 2147483647, %v1003
  %vm1030 = vcmp.eq.f32.partialorder %v1029, 8.507059e+37
  %v1031 = vand.u32 %v1003, 2147483648
  %v1032 = vor.u32 1.1754944e-38, %v1031
  %v1033 = vsel %vm1030, %v1032, %v1028
  %v1034 = vmul.f32 1.0, %v1033
  %v1035 = vrcp.pop %v1004
  %v1036 = vmul.f32 %v1004, %v1035
  %v1037 = vsub.f32 1.0, %v1036
  %v1038 = vmul.f32 %v1035, %v1037
  %v1039 = vadd.f32 %v1035, %v1038
  %vm1040 = vweird.f32 %v1004
  %vm1041 = vweird.f32 %v1035
  %vm1042 = vmor %vm1040, %vm1041
  %v1043 = vsel %vm1042, %v1035, %v1039
  %v1044 = vand.u32 2147483647, %v1004
  %vm1045 = vcmp.eq.f32.partialorder %v1044, 8.507059e+37
  %v1046 = vand.u32 %v1004, 2147483648
  %v1047 = vor.u32 1.1754944e-38, %v1046
  %v1048 = vsel %vm1045, %v1047, %v1043
  %v1049 = vmul.f32 1.0, %v1048
  %v1050 = vtanh.pop %v932
  %v1051 = vtanh.pop %v960
  %v1052 = vtanh.pop %v991
  %v1053 = vmul.f32 %v1019, %v866
  %1055 = vrot.lane.b32.xlu0 %v1050, 56
  %v1056 = vpop.permute.xlu0 %1055
  %v1058 = vmul.f32 %v1019, %v1056
  %1060 = vrot.lane.b32.xlu0 %v1058, 24
  %v1061 = vpop.permute.xlu0 %1060
  %v1063 = vadd.f32 %v1053, %v1061
  %v1064 = vmul.f32 %v1034, %v877
  %1066 = vrot.lane.b32.xlu0 %v1051, 56
  %v1067 = vpop.permute.xlu0 %1066
  %v1069 = vmul.f32 %v1034, %v1067
  %1071 = vrot.lane.b32.xlu0 %v1069, 24
  %v1072 = vpop.permute.xlu0 %1071
  %v1074 = vadd.f32 %v1064, %v1072
  %v1075 = vmul.f32 %v1049, %v888
  %1077 = vrot.lane.b32.xlu0 %v1052, 56
  %v1078 = vpop.permute.xlu0 %1077
  %v1080 = vmul.f32 %v1049, %v1078
  %1082 = vrot.lane.b32.xlu0 %v1080, 24
  %v1083 = vpop.permute.xlu0 %1082
  %v1085 = vadd.f32 %v1075, %v1083
  %v1086 = vtanh.pop %v1063
  %v1087 = vtanh.pop %v1074
  %v1088 = vtanh.pop %v1085
  %1090 = vrot.lane.b32.xlu0 %v1086, 24
  %v1091 = vpop.permute.xlu0 %1090
  %v1093 = vmul.f32 %v1019, %v1091
  %1095 = vrot.lane.b32.xlu0 %v1087, 24
  %v1096 = vpop.permute.xlu0 %1095
  %v1098 = vmul.f32 %v1034, %v1096
  %1100 = vrot.lane.b32.xlu0 %v1088, 24
  %v1101 = vpop.permute.xlu0 %1100
  %v1103 = vmul.f32 %v1049, %v1101
  %1105 = vrot.lane.b32.xlu0 %v1093, 80
  %v1106 = vpop.permute.xlu0 %1105
  %v1107 = vsel %vm67, %v1106, 0
  %1109 = vmatpush.msra.mxu0 0.0
  %1110 = vmatpush.msra.mxu0 0.0
  %1111 = vmatpush.msra.mxu0 0.0
  %1112 = vmatpush.msra.mxu0 0.0
  %1113 = vmatpush.msra.mxu0 0.0
  %1114 = vmatpush.msra.mxu0 0.0
  %1115 = vmatpush.msra.mxu0 0.0
  %1116 = vmatpush.msra.mxu0 0.0
  %1117 = vmatpush.msra.mxu0 0.0
  %1118 = vmatpush.msra.mxu0 0.0
  %1119 = vmatpush.msra.mxu0 0.0
  %1120 = vmatpush.msra.mxu0 0.0
  %1121 = vmatpush.msra.mxu0 0.0
  %1122 = vmatpush.msra.mxu0 %v39
  %1123 = vmatpush.msra.mxu0 %v38
  %1124 = vmatpush.msra.mxu0 %v37
  %1125 = vmatmul.f32.gmra.mxu0 %v1107
  %v1126 = vpop.f32.mrf.mxu0
  %v1127 = vadd.f32 0.0, %v1126
  %1128 = vdwg.mxu0
  %v1129 = vadd.f32 %v128, %v1127
  %1132 = vrot.lane.b32.xlu0 %v1098, 104
  %v1133 = vpop.permute.xlu0 %1132
  %v1135 = vsel %vm67, %v1106, %v1133
  %v1137 = vsel %vm222, %v1135, 0
  %1139 = vmatpush.msra.mxu0 0.0
  %1140 = vmatpush.msra.mxu0 0.0
  %1141 = vmatpush.msra.mxu0 0.0
  %1142 = vmatpush.msra.mxu0 0.0
  %1143 = vmatpush.msra.mxu0 0.0
  %1144 = vmatpush.msra.mxu0 0.0
  %1145 = vmatpush.msra.mxu0 0.0
  %1146 = vmatpush.msra.mxu0 0.0
  %1147 = vmatpush.msra.mxu0 0.0
  %1148 = vmatpush.msra.mxu0 0.0
  %1149 = vmatpush.msra.mxu0 %v45
  %1150 = vmatpush.msra.mxu0 %v44
  %1151 = vmatpush.msra.mxu0 %v43
  %1152 = vmatpush.msra.mxu0 %v42
  %1153 = vmatpush.msra.mxu0 %v41
  %1154 = vmatpush.msra.mxu0 %v40
  %1155 = vmatmul.f32.gmra.mxu0 %v1137
  %v1156 = vpop.f32.mrf.mxu0
  %v1157 = vadd.f32 %v57, %v1156
  %1158 = vdwg.mxu0
  %1159 = vrot.lane.b32.xlu0 %v1098, 80
  %v1160 = vpop.permute.xlu0 %1159
  %1163 = vrot.lane.b32.xlu0 %v1103, 104
  %v1164 = vpop.permute.xlu0 %1163
  %v1166 = vsel %vm67, %v1160, %v1164
  %v1168 = vsel %vm222, %v1166, 0
  %1170 = vmatpush.msra.mxu0 0.0
  %1171 = vmatpush.msra.mxu0 0.0
  %1172 = vmatpush.msra.mxu0 0.0
  %1173 = vmatpush.msra.mxu0 0.0
  %1174 = vmatpush.msra.mxu0 0.0
  %1175 = vmatpush.msra.mxu0 0.0
  %1176 = vmatpush.msra.mxu0 0.0
  %1177 = vmatpush.msra.mxu0 0.0
  %1178 = vmatpush.msra.mxu0 0.0
  %1179 = vmatpush.msra.mxu0 0.0
  %1180 = vmatpush.msra.mxu0 %v52
  %1181 = vmatpush.msra.mxu0 %v51
  %1182 = vmatpush.msra.mxu0 %v50
  %1183 = vmatpush.msra.mxu0 %v49
  %1184 = vmatpush.msra.mxu0 %v48
  %1185 = vmatpush.msra.mxu0 %v47
  %1186 = vmatmul.f32.gmra.mxu0 %v1168
  %v1187 = vpop.f32.mrf.mxu0
  %v1188 = vadd.f32 %v62, %v1187
  %1189 = vdwg.mxu0
  %v1190 = vxor.u32 %v1129, 2147483648
  %v1191 = vxor.u32 %v1157, 2147483648
  %v1192 = vxor.u32 %v1188, 2147483648
  %v1193 = vmul.f32 %v1190, 1.442695
  %v1194 = vpow.pop %v1193
  %v1195 = vmul.f32 %v1191, 1.442695
  %v1196 = vpow.pop %v1195
  %v1197 = vmul.f32 %v1192, 1.442695
  %v1198 = vpow.pop %v1197
  %v1199 = vadd.f32 %v1194, 1.0
  %v1200 = vadd.f32 %v1196, 1.0
  %v1201 = vadd.f32 %v1198, 1.0
  %v1202 = vrcp.pop %v1199
  %v1203 = vmul.f32 %v1199, %v1202
  %v1204 = vsub.f32 1.0, %v1203
  %v1205 = vmul.f32 %v1202, %v1204
  %v1206 = vadd.f32 %v1202, %v1205
  %vm1207 = vweird.f32 %v1199
  %vm1208 = vweird.f32 %v1202
  %vm1209 = vmor %vm1207, %vm1208
  %v1210 = vsel %vm1209, %v1202, %v1206
  %v1211 = vand.u32 2147483647, %v1199
  %vm1212 = vcmp.eq.f32.partialorder %v1211, 8.507059e+37
  %v1213 = vand.u32 %v1199, 2147483648
  %v1214 = vor.u32 1.1754944e-38, %v1213
  %v1215 = vsel %vm1212, %v1214, %v1210
  %v1216 = vmul.f32 1.0, %v1215
  %v1217 = vrcp.pop %v1200
  %v1218 = vmul.f32 %v1200, %v1217
  %v1219 = vsub.f32 1.0, %v1218
  %v1220 = vmul.f32 %v1217, %v1219
  %v1221 = vadd.f32 %v1217, %v1220
  %vm1222 = vweird.f32 %v1200
  %vm1223 = vweird.f32 %v1217
  %vm1224 = vmor %vm1222, %vm1223
  %v1225 = vsel %vm1224, %v1217, %v1221
  %v1226 = vand.u32 2147483647, %v1200
  %vm1227 = vcmp.eq.f32.partialorder %v1226, 8.507059e+37
  %v1228 = vand.u32 %v1200, 2147483648
  %v1229 = vor.u32 1.1754944e-38, %v1228
  %v1230 = vsel %vm1227, %v1229, %v1225
  %v1231 = vmul.f32 1.0, %v1230
  %v1232 = vrcp.pop %v1201
  %v1233 = vmul.f32 %v1201, %v1232
  %v1234 = vsub.f32 1.0, %v1233
  %v1235 = vmul.f32 %v1232, %v1234
  %v1236 = vadd.f32 %v1232, %v1235
  %vm1237 = vweird.f32 %v1201
  %vm1238 = vweird.f32 %v1232
  %vm1239 = vmor %vm1237, %vm1238
  %v1240 = vsel %vm1239, %v1232, %v1236
  %v1241 = vand.u32 2147483647, %v1201
  %vm1242 = vcmp.eq.f32.partialorder %v1241, 8.507059e+37
  %v1243 = vand.u32 %v1201, 2147483648
  %v1244 = vor.u32 1.1754944e-38, %v1243
  %v1245 = vsel %vm1242, %v1244, %v1240
  %v1246 = vmul.f32 1.0, %v1245
  %v1247 = vtanh.pop %v1129
  %v1248 = vtanh.pop %v1157
  %v1249 = vtanh.pop %v1188
  %v1250 = vmul.f32 %v1216, %v1063
  %1252 = vrot.lane.b32.xlu0 %v1247, 56
  %v1253 = vpop.permute.xlu0 %1252
  %v1255 = vmul.f32 %v1216, %v1253
  %1257 = vrot.lane.b32.xlu0 %v1255, 24
  %v1258 = vpop.permute.xlu0 %1257
  %v1260 = vadd.f32 %v1250, %v1258
  %v1261 = vmul.f32 %v1231, %v1074
  %1263 = vrot.lane.b32.xlu0 %v1248, 56
  %v1264 = vpop.permute.xlu0 %1263
  %v1266 = vmul.f32 %v1231, %v1264
  %1268 = vrot.lane.b32.xlu0 %v1266, 24
  %v1269 = vpop.permute.xlu0 %1268
  %v1271 = vadd.f32 %v1261, %v1269
  %v1272 = vmul.f32 %v1246, %v1085
  %1274 = vrot.lane.b32.xlu0 %v1249, 56
  %v1275 = vpop.permute.xlu0 %1274
  %v1277 = vmul.f32 %v1246, %v1275
  %1279 = vrot.lane.b32.xlu0 %v1277, 24
  %v1280 = vpop.permute.xlu0 %1279
  %v1282 = vadd.f32 %v1272, %v1280
  %v1283 = vtanh.pop %v1260
  %v1284 = vtanh.pop %v1271
  %v1285 = vtanh.pop %v1282
  %1287 = vrot.lane.b32.xlu0 %v1283, 24
  %v1288 = vpop.permute.xlu0 %1287
  %v1290 = vmul.f32 %v1216, %v1288
  %1292 = vrot.lane.b32.xlu0 %v1284, 24
  %v1293 = vpop.permute.xlu0 %1292
  %v1295 = vmul.f32 %v1231, %v1293
  %1297 = vrot.lane.b32.xlu0 %v1285, 24
  %v1298 = vpop.permute.xlu0 %1297
  %v1300 = vmul.f32 %v1246, %v1298
  %1302 = vrot.lane.b32.xlu0 %v1290, 80
  %v1303 = vpop.permute.xlu0 %1302
  %v1304 = vsel %vm67, %v1303, 0
  %1306 = vmatpush.msra.mxu0 0.0
  %1307 = vmatpush.msra.mxu0 0.0
  %1308 = vmatpush.msra.mxu0 0.0
  %1309 = vmatpush.msra.mxu0 0.0
  %1310 = vmatpush.msra.mxu0 0.0
  %1311 = vmatpush.msra.mxu0 0.0
  %1312 = vmatpush.msra.mxu0 0.0
  %1313 = vmatpush.msra.mxu0 0.0
  %1314 = vmatpush.msra.mxu0 0.0
  %1315 = vmatpush.msra.mxu0 0.0
  %1316 = vmatpush.msra.mxu0 0.0
  %1317 = vmatpush.msra.mxu0 0.0
  %1318 = vmatpush.msra.mxu0 0.0
  %1319 = vmatpush.msra.mxu0 %v39
  %1320 = vmatpush.msra.mxu0 %v38
  %1321 = vmatpush.msra.mxu0 %v37
  %1322 = vmatmul.f32.gmra.mxu0 %v1304
  %v1323 = vpop.f32.mrf.mxu0
  %v1324 = vadd.f32 0.0, %v1323
  %1325 = vdwg.mxu0
  %v1326 = vadd.f32 %v131, %v1324
  %1329 = vrot.lane.b32.xlu0 %v1295, 104
  %v1330 = vpop.permute.xlu0 %1329
  %v1332 = vsel %vm67, %v1303, %v1330
  %v1334 = vsel %vm222, %v1332, 0
  %1336 = vmatpush.msra.mxu0 0.0
  %1337 = vmatpush.msra.mxu0 0.0
  %1338 = vmatpush.msra.mxu0 0.0
  %1339 = vmatpush.msra.mxu0 0.0
  %1340 = vmatpush.msra.mxu0 0.0
  %1341 = vmatpush.msra.mxu0 0.0
  %1342 = vmatpush.msra.mxu0 0.0
  %1343 = vmatpush.msra.mxu0 0.0
  %1344 = vmatpush.msra.mxu0 0.0
  %1345 = vmatpush.msra.mxu0 0.0
  %1346 = vmatpush.msra.mxu0 %v45
  %1347 = vmatpush.msra.mxu0 %v44
  %1348 = vmatpush.msra.mxu0 %v43
  %1349 = vmatpush.msra.mxu0 %v42
  %1350 = vmatpush.msra.mxu0 %v41
  %1351 = vmatpush.msra.mxu0 %v40
  %1352 = vmatmul.f32.gmra.mxu0 %v1334
  %v1353 = vpop.f32.mrf.mxu0
  %v1354 = vadd.f32 %v57, %v1353
  %1355 = vdwg.mxu0
  %1356 = vrot.lane.b32.xlu0 %v1295, 80
  %v1357 = vpop.permute.xlu0 %1356
  %1360 = vrot.lane.b32.xlu0 %v1300, 104
  %v1361 = vpop.permute.xlu0 %1360
  %v1363 = vsel %vm67, %v1357, %v1361
  %v1365 = vsel %vm222, %v1363, 0
  %1367 = vmatpush.msra.mxu0 0.0
  %1368 = vmatpush.msra.mxu0 0.0
  %1369 = vmatpush.msra.mxu0 0.0
  %1370 = vmatpush.msra.mxu0 0.0
  %1371 = vmatpush.msra.mxu0 0.0
  %1372 = vmatpush.msra.mxu0 0.0
  %1373 = vmatpush.msra.mxu0 0.0
  %1374 = vmatpush.msra.mxu0 0.0
  %1375 = vmatpush.msra.mxu0 0.0
  %1376 = vmatpush.msra.mxu0 0.0
  %1377 = vmatpush.msra.mxu0 %v52
  %1378 = vmatpush.msra.mxu0 %v51
  %1379 = vmatpush.msra.mxu0 %v50
  %1380 = vmatpush.msra.mxu0 %v49
  %1381 = vmatpush.msra.mxu0 %v48
  %1382 = vmatpush.msra.mxu0 %v47
  %1383 = vmatmul.f32.gmra.mxu0 %v1365
  %v1384 = vpop.f32.mrf.mxu0
  %v1385 = vadd.f32 %v62, %v1384
  %1386 = vdwg.mxu0
  %v1387 = vxor.u32 %v1326, 2147483648
  %v1388 = vxor.u32 %v1354, 2147483648
  %v1389 = vxor.u32 %v1385, 2147483648
  %v1390 = vmul.f32 %v1387, 1.442695
  %v1391 = vpow.pop %v1390
  %v1392 = vmul.f32 %v1388, 1.442695
  %v1393 = vpow.pop %v1392
  %v1394 = vmul.f32 %v1389, 1.442695
  %v1395 = vpow.pop %v1394
  %v1396 = vadd.f32 %v1391, 1.0
  %v1397 = vadd.f32 %v1393, 1.0
  %v1398 = vadd.f32 %v1395, 1.0
  %v1399 = vrcp.pop %v1396
  %v1400 = vmul.f32 %v1396, %v1399
  %v1401 = vsub.f32 1.0, %v1400
  %v1402 = vmul.f32 %v1399, %v1401
  %v1403 = vadd.f32 %v1399, %v1402
  %vm1404 = vweird.f32 %v1396
  %vm1405 = vweird.f32 %v1399
  %vm1406 = vmor %vm1404, %vm1405
  %v1407 = vsel %vm1406, %v1399, %v1403
  %v1408 = vand.u32 2147483647, %v1396
  %vm1409 = vcmp.eq.f32.partialorder %v1408, 8.507059e+37
  %v1410 = vand.u32 %v1396, 2147483648
  %v1411 = vor.u32 1.1754944e-38, %v1410
  %v1412 = vsel %vm1409, %v1411, %v1407
  %v1413 = vmul.f32 1.0, %v1412
  %v1414 = vrcp.pop %v1397
  %v1415 = vmul.f32 %v1397, %v1414
  %v1416 = vsub.f32 1.0, %v1415
  %v1417 = vmul.f32 %v1414, %v1416
  %v1418 = vadd.f32 %v1414, %v1417
  %vm1419 = vweird.f32 %v1397
  %vm1420 = vweird.f32 %v1414
  %vm1421 = vmor %vm1419, %vm1420
  %v1422 = vsel %vm1421, %v1414, %v1418
  %v1423 = vand.u32 2147483647, %v1397
  %vm1424 = vcmp.eq.f32.partialorder %v1423, 8.507059e+37
  %v1425 = vand.u32 %v1397, 2147483648
  %v1426 = vor.u32 1.1754944e-38, %v1425
  %v1427 = vsel %vm1424, %v1426, %v1422
  %v1428 = vmul.f32 1.0, %v1427
  %v1429 = vrcp.pop %v1398
  %v1430 = vmul.f32 %v1398, %v1429
  %v1431 = vsub.f32 1.0, %v1430
  %v1432 = vmul.f32 %v1429, %v1431
  %v1433 = vadd.f32 %v1429, %v1432
  %vm1434 = vweird.f32 %v1398
  %vm1435 = vweird.f32 %v1429
  %vm1436 = vmor %vm1434, %vm1435
  %v1437 = vsel %vm1436, %v1429, %v1433
  %v1438 = vand.u32 2147483647, %v1398
  %vm1439 = vcmp.eq.f32.partialorder %v1438, 8.507059e+37
  %v1440 = vand.u32 %v1398, 2147483648
  %v1441 = vor.u32 1.1754944e-38, %v1440
  %v1442 = vsel %vm1439, %v1441, %v1437
  %v1443 = vmul.f32 1.0, %v1442
  %v1444 = vtanh.pop %v1326
  %v1445 = vtanh.pop %v1354
  %v1446 = vtanh.pop %v1385
  %v1447 = vmul.f32 %v1413, %v1260
  %1449 = vrot.lane.b32.xlu0 %v1444, 56
  %v1450 = vpop.permute.xlu0 %1449
  %v1452 = vmul.f32 %v1413, %v1450
  %1454 = vrot.lane.b32.xlu0 %v1452, 24
  %v1455 = vpop.permute.xlu0 %1454
  %v1457 = vadd.f32 %v1447, %v1455
  %v1458 = vmul.f32 %v1428, %v1271
  %1460 = vrot.lane.b32.xlu0 %v1445, 56
  %v1461 = vpop.permute.xlu0 %1460
  %v1463 = vmul.f32 %v1428, %v1461
  %1465 = vrot.lane.b32.xlu0 %v1463, 24
  %v1466 = vpop.permute.xlu0 %1465
  %v1468 = vadd.f32 %v1458, %v1466
  %v1469 = vmul.f32 %v1443, %v1282
  %1471 = vrot.lane.b32.xlu0 %v1446, 56
  %v1472 = vpop.permute.xlu0 %1471
  %v1474 = vmul.f32 %v1443, %v1472
  %1476 = vrot.lane.b32.xlu0 %v1474, 24
  %v1477 = vpop.permute.xlu0 %1476
  %v1479 = vadd.f32 %v1469, %v1477
  %v1480 = vtanh.pop %v1457
  %v1481 = vtanh.pop %v1468
  %v1482 = vtanh.pop %v1479
  %1484 = vrot.lane.b32.xlu0 %v1480, 24
  %v1485 = vpop.permute.xlu0 %1484
  %v1487 = vmul.f32 %v1413, %v1485
  %1489 = vrot.lane.b32.xlu0 %v1481, 24
  %v1490 = vpop.permute.xlu0 %1489
  %v1492 = vmul.f32 %v1428, %v1490
  %1494 = vrot.lane.b32.xlu0 %v1482, 24
  %v1495 = vpop.permute.xlu0 %1494
  %v1497 = vmul.f32 %v1443, %v1495
  %1499 = vrot.lane.b32.xlu0 %v1487, 80
  %v1500 = vpop.permute.xlu0 %1499
  %1503 = vrot.lane.b32.xlu0 %v1492, 104
  %v1504 = vpop.permute.xlu0 %1503
  %v1506 = vsel %vm67, %v1500, %v1504
  %v1508 = vsel %vm222, %v1506, 0
  %1510 = vmatpush.msra.mxu0 0.0
  %1511 = vmatpush.msra.mxu0 0.0
  %1512 = vmatpush.msra.mxu0 0.0
  %1513 = vmatpush.msra.mxu0 0.0
  %1514 = vmatpush.msra.mxu0 0.0
  %1515 = vmatpush.msra.mxu0 0.0
  %1516 = vmatpush.msra.mxu0 0.0
  %1517 = vmatpush.msra.mxu0 0.0
  %1518 = vmatpush.msra.mxu0 0.0
  %1519 = vmatpush.msra.mxu0 0.0
  %1520 = vmatpush.msra.mxu0 %v45
  %1521 = vmatpush.msra.mxu0 %v44
  %1522 = vmatpush.msra.mxu0 %v43
  %1523 = vmatpush.msra.mxu0 %v42
  %1524 = vmatpush.msra.mxu0 %v41
  %1525 = vmatpush.msra.mxu0 %v40
  %1526 = vmatmul.f32.gmra.mxu0 %v1508
  %v1527 = vpop.f32.mrf.mxu0
  %v1528 = vadd.f32 %v57, %v1527
  %1529 = vdwg.mxu0
  %1530 = vrot.lane.b32.xlu0 %v1492, 80
  %v1531 = vpop.permute.xlu0 %1530
  %1534 = vrot.lane.b32.xlu0 %v1497, 104
  %v1535 = vpop.permute.xlu0 %1534
  %v1537 = vsel %vm67, %v1531, %v1535
  %v1539 = vsel %vm222, %v1537, 0
  %1541 = vmatpush.msra.mxu0 0.0
  %1542 = vmatpush.msra.mxu0 0.0
  %1543 = vmatpush.msra.mxu0 0.0
  %1544 = vmatpush.msra.mxu0 0.0
  %1545 = vmatpush.msra.mxu0 0.0
  %1546 = vmatpush.msra.mxu0 0.0
  %1547 = vmatpush.msra.mxu0 0.0
  %1548 = vmatpush.msra.mxu0 0.0
  %1549 = vmatpush.msra.mxu0 0.0
  %1550 = vmatpush.msra.mxu0 0.0
  %1551 = vmatpush.msra.mxu0 %v52
  %1552 = vmatpush.msra.mxu0 %v51
  %1553 = vmatpush.msra.mxu0 %v50
  %1554 = vmatpush.msra.mxu0 %v49
  %1555 = vmatpush.msra.mxu0 %v48
  %1556 = vmatpush.msra.mxu0 %v47
  %1557 = vmatmul.f32.gmra.mxu0 %v1539
  %v1558 = vpop.f32.mrf.mxu0
  %v1559 = vadd.f32 %v62, %v1558
  %1560 = vdwg.mxu0
  %v1561 = vxor.u32 %v1528, 2147483648
  %v1562 = vxor.u32 %v1559, 2147483648
  %v1563 = vmul.f32 %v1561, 1.442695
  %v1564 = vpow.pop %v1563
  %v1565 = vmul.f32 %v1562, 1.442695
  %v1566 = vpow.pop %v1565
  %v1567 = vadd.f32 %v1564, 1.0
  %v1568 = vadd.f32 %v1566, 1.0
  %v1569 = vrcp.pop %v1567
  %v1570 = vmul.f32 %v1567, %v1569
  %v1571 = vsub.f32 1.0, %v1570
  %v1572 = vmul.f32 %v1569, %v1571
  %v1573 = vadd.f32 %v1569, %v1572
  %vm1574 = vweird.f32 %v1567
  %vm1575 = vweird.f32 %v1569
  %vm1576 = vmor %vm1574, %vm1575
  %v1577 = vsel %vm1576, %v1569, %v1573
  %v1578 = vand.u32 2147483647, %v1567
  %vm1579 = vcmp.eq.f32.partialorder %v1578, 8.507059e+37
  %v1580 = vand.u32 %v1567, 2147483648
  %v1581 = vor.u32 1.1754944e-38, %v1580
  %v1582 = vsel %vm1579, %v1581, %v1577
  %v1583 = vmul.f32 1.0, %v1582
  %v1584 = vrcp.pop %v1568
  %v1585 = vmul.f32 %v1568, %v1584
  %v1586 = vsub.f32 1.0, %v1585
  %v1587 = vmul.f32 %v1584, %v1586
  %v1588 = vadd.f32 %v1584, %v1587
  %vm1589 = vweird.f32 %v1568
  %vm1590 = vweird.f32 %v1584
  %vm1591 = vmor %vm1589, %vm1590
  %v1592 = vsel %vm1591, %v1584, %v1588
  %v1593 = vand.u32 2147483647, %v1568
  %vm1594 = vcmp.eq.f32.partialorder %v1593, 8.507059e+37
  %v1595 = vand.u32 %v1568, 2147483648
  %v1596 = vor.u32 1.1754944e-38, %v1595
  %v1597 = vsel %vm1594, %v1596, %v1592
  %v1598 = vmul.f32 1.0, %v1597
  %v1599 = vtanh.pop %v1528
  %v1600 = vtanh.pop %v1559
  %v1601 = vmul.f32 %v1583, %v1468
  %1603 = vrot.lane.b32.xlu0 %v1599, 56
  %v1604 = vpop.permute.xlu0 %1603
  %v1606 = vmul.f32 %v1583, %v1604
  %1608 = vrot.lane.b32.xlu0 %v1606, 24
  %v1609 = vpop.permute.xlu0 %1608
  %v1611 = vadd.f32 %v1601, %v1609
  %v1612 = vmul.f32 %v1598, %v1479
  %1614 = vrot.lane.b32.xlu0 %v1600, 56
  %v1615 = vpop.permute.xlu0 %1614
  %v1617 = vmul.f32 %v1598, %v1615
  %1619 = vrot.lane.b32.xlu0 %v1617, 24
  %v1620 = vpop.permute.xlu0 %1619
  %v1622 = vadd.f32 %v1612, %v1620
  %v1623 = vtanh.pop %v1611
  %v1624 = vtanh.pop %v1622
  %1626 = vrot.lane.b32.xlu0 %v1623, 24
  %v1627 = vpop.permute.xlu0 %1626
  %v1629 = vmul.f32 %v1583, %v1627
  %1631 = vrot.lane.b32.xlu0 %v1624, 24
  %v1632 = vpop.permute.xlu0 %1631
  %v1634 = vmul.f32 %v1598, %v1632
  %1636 = vrot.lane.b32.xlu0 %v1629, 80
  %v1637 = vpop.permute.xlu0 %1636
  %1640 = vrot.lane.b32.xlu0 %v1634, 104
  %v1641 = vpop.permute.xlu0 %1640
  %v1643 = vsel %vm67, %v1637, %v1641
  %v1645 = vsel %vm222, %v1643, 0
  %1647 = vmatpush.msra.mxu0 0.0
  %1648 = vmatpush.msra.mxu0 0.0
  %1649 = vmatpush.msra.mxu0 0.0
  %1650 = vmatpush.msra.mxu0 0.0
  %1651 = vmatpush.msra.mxu0 0.0
  %1652 = vmatpush.msra.mxu0 0.0
  %1653 = vmatpush.msra.mxu0 0.0
  %1654 = vmatpush.msra.mxu0 0.0
  %1655 = vmatpush.msra.mxu0 0.0
  %1656 = vmatpush.msra.mxu0 0.0
  %1657 = vmatpush.msra.mxu0 %v52
  %1658 = vmatpush.msra.mxu0 %v51
  %1659 = vmatpush.msra.mxu0 %v50
  %1660 = vmatpush.msra.mxu0 %v49
  %1661 = vmatpush.msra.mxu0 %v48
  %1662 = vmatpush.msra.mxu0 %v47
  %1663 = vmatmul.f32.gmra.mxu0 %v1645
  %v1664 = vpop.f32.mrf.mxu0
  %v1665 = vadd.f32 %v62, %v1664
  %1666 = vdwg.mxu0
  %v1667 = vxor.u32 %v1665, 2147483648
  %v1668 = vmul.f32 %v1667, 1.442695
  %v1669 = vpow.pop %v1668
  %v1670 = vadd.f32 %v1669, 1.0
  %v1671 = vrcp.pop %v1670
  %v1672 = vmul.f32 %v1670, %v1671
  %v1673 = vsub.f32 1.0, %v1672
  %v1674 = vmul.f32 %v1671, %v1673
  %v1675 = vadd.f32 %v1671, %v1674
  %vm1676 = vweird.f32 %v1670
  %vm1677 = vweird.f32 %v1671
  %vm1678 = vmor %vm1676, %vm1677
  %v1679 = vsel %vm1678, %v1671, %v1675
  %v1680 = vand.u32 2147483647, %v1670
  %vm1681 = vcmp.eq.f32.partialorder %v1680, 8.507059e+37
  %v1682 = vand.u32 %v1670, 2147483648
  %v1683 = vor.u32 1.1754944e-38, %v1682
  %v1684 = vsel %vm1681, %v1683, %v1679
  %v1685 = vmul.f32 1.0, %v1684
  %v1686 = vtanh.pop %v1665
  %v1687 = vmul.f32 %v1685, %v1622
  %1689 = vrot.lane.b32.xlu0 %v1686, 56
  %v1690 = vpop.permute.xlu0 %1689
  %v1692 = vmul.f32 %v1685, %v1690
  %1694 = vrot.lane.b32.xlu0 %v1692, 24
  %v1695 = vpop.permute.xlu0 %1694
  %v1697 = vadd.f32 %v1687, %v1695
  %v1698 = vtanh.pop %v1697
  %1700 = vrot.lane.b32.xlu0 %v1698, 24
  %v1701 = vpop.permute.xlu0 %1700
  %v1703 = vmul.f32 %v1685, %v1701
  %v1704 = vld [vmem:[%s5] sm:$0xff]
  %v1705 = vld [vmem:[%s5 + $0x8] sm:$0xff]
  %v1706 = vld [vmem:[%s5 + $0x10] sm:$0xff]
  %v1707 = vld [vmem:[%s6] sm:$0x1]
  %v1709 = vperm.slane %v1707, 0
  %1712 = vrot.lane.b32.xlu0 %v512, 80
  %v1713 = vpop.permute.xlu0 %1712
  %1714 = vrot.lane.b32.xlu0 %v709, 80
  %v1715 = vpop.permute.xlu0 %1714
  %1716 = vrot.lane.b32.xlu0 %v906, 80
  %v1717 = vpop.permute.xlu0 %1716
  %1718 = vrot.lane.b32.xlu0 %v1103, 80
  %v1719 = vpop.permute.xlu0 %1718
  %1720 = vrot.lane.b32.xlu0 %v1300, 80
  %v1721 = vpop.permute.xlu0 %1720
  %1722 = vrot.lane.b32.xlu0 %v1497, 80
  %v1723 = vpop.permute.xlu0 %1722
  %1724 = vrot.lane.b32.xlu0 %v1634, 80
  %v1725 = vpop.permute.xlu0 %1724
  %1726 = vrot.lane.b32.xlu0 %v1703, 80
  %v1727 = vpop.permute.xlu0 %1726
  %v1728 = vsel %vm67, %v1713, 0
  %v1730 = vsel %vm67, %v1715, 0
  %v1732 = vsel %vm67, %v1717, 0
  %v1734 = vsel %vm67, %v1719, 0
  %v1736 = vsel %vm67, %v1721, 0
  %v1738 = vsel %vm67, %v1723, 0
  %v1740 = vsel %vm67, %v1725, 0
  %v1742 = vsel %vm67, %v1727, 0
  %1744 = vmatpush.msra.mxu0 0.0
  %1745 = vmatpush.msra.mxu0 0.0
  %1746 = vmatpush.msra.mxu0 0.0
  %1747 = vmatpush.msra.mxu0 0.0
  %1748 = vmatpush.msra.mxu0 0.0
  %1749 = vmatpush.msra.mxu0 0.0
  %1750 = vmatpush.msra.mxu0 0.0
  %1751 = vmatpush.msra.mxu0 0.0
  %1752 = vmatpush.msra.mxu0 0.0
  %1753 = vmatpush.msra.mxu0 0.0
  %1754 = vmatpush.msra.mxu0 0.0
  %1755 = vmatpush.msra.mxu0 0.0
  %1756 = vmatpush.msra.mxu0 0.0
  %1757 = vmatpush.msra.mxu0 %v1706
  %1758 = vmatpush.msra.mxu0 %v1705
  %1759 = vmatpush.msra.mxu0 %v1704
  %1760 = vmatmul.f32.gmra.mxu0 %v1728
  %v1761 = vpop.f32.mrf.mxu0
  %v1762 = vadd.f32 %v1709, %v1761
  %1763 = vmatmul.f32.gmra.mxu0 %v1730
  %v1764 = vpop.f32.mrf.mxu0
  %v1765 = vadd.f32 %v1709, %v1764
  %1766 = vmatmul.f32.gmra.mxu0 %v1732
  %v1767 = vpop.f32.mrf.mxu0
  %v1768 = vadd.f32 %v1709, %v1767
  %1769 = vmatmul.f32.gmra.mxu0 %v1734
  %v1770 = vpop.f32.mrf.mxu0
  %v1771 = vadd.f32 %v1709, %v1770
  %1772 = vmatmul.f32.gmra.mxu0 %v1736
  %v1773 = vpop.f32.mrf.mxu0
  %v1774 = vadd.f32 %v1709, %v1773
  %1775 = vmatmul.f32.gmra.mxu0 %v1738
  %v1776 = vpop.f32.mrf.mxu0
  %v1777 = vadd.f32 %v1709, %v1776
  %1778 = vmatmul.f32.gmra.mxu0 %v1740
  %v1779 = vpop.f32.mrf.mxu0
  %v1780 = vadd.f32 %v1709, %v1779
  %1781 = vmatmul.f32.gmra.mxu0 %v1742
  %v1782 = vpop.f32.mrf.mxu0
  %v1783 = vadd.f32 %v1709, %v1782
  %1784 = vdwg.mxu0
  %v1785 = vxor.u32 %v1762, 2147483648
  %v1786 = vxor.u32 %v1765, 2147483648
  %v1787 = vxor.u32 %v1768, 2147483648
  %v1788 = vxor.u32 %v1771, 2147483648
  %v1789 = vxor.u32 %v1774, 2147483648
  %v1790 = vxor.u32 %v1777, 2147483648
  %v1791 = vxor.u32 %v1780, 2147483648
  %v1792 = vxor.u32 %v1783, 2147483648
  %v1793 = vmul.f32 %v1785, 1.442695
  %v1794 = vpow.pop %v1793
  %v1795 = vmul.f32 %v1786, 1.442695
  %v1796 = vpow.pop %v1795
  %v1797 = vmul.f32 %v1787, 1.442695
  %v1798 = vpow.pop %v1797
  %v1799 = vmul.f32 %v1788, 1.442695
  %v1800 = vpow.pop %v1799
  %v1801 = vmul.f32 %v1789, 1.442695
  %v1802 = vpow.pop %v1801
  %v1803 = vmul.f32 %v1790, 1.442695
  %v1804 = vpow.pop %v1803
  %v1805 = vmul.f32 %v1791, 1.442695
  %v1806 = vpow.pop %v1805
  %v1807 = vmul.f32 %v1792, 1.442695
  %v1808 = vpow.pop %v1807
  %v1809 = vadd.f32 %v1794, 1.0
  %v1810 = vadd.f32 %v1796, 1.0
  %v1811 = vadd.f32 %v1798, 1.0
  %v1812 = vadd.f32 %v1800, 1.0
  %v1813 = vadd.f32 %v1802, 1.0
  %v1814 = vadd.f32 %v1804, 1.0
  %v1815 = vadd.f32 %v1806, 1.0
  %v1816 = vadd.f32 %v1808, 1.0
  %v1817 = vrcp.pop %v1809
  %v1818 = vmul.f32 %v1809, %v1817
  %v1819 = vsub.f32 1.0, %v1818
  %v1820 = vmul.f32 %v1817, %v1819
  %v1821 = vadd.f32 %v1817, %v1820
  %vm1822 = vweird.f32 %v1809
  %vm1823 = vweird.f32 %v1817
  %vm1824 = vmor %vm1822, %vm1823
  %v1825 = vsel %vm1824, %v1817, %v1821
  %v1826 = vand.u32 2147483647, %v1809
  %vm1827 = vcmp.eq.f32.partialorder %v1826, 8.507059e+37
  %v1828 = vand.u32 %v1809, 2147483648
  %v1829 = vor.u32 1.1754944e-38, %v1828
  %v1830 = vsel %vm1827, %v1829, %v1825
  %v1831 = vmul.f32 1.0, %v1830
  %v1832 = vrcp.pop %v1810
  %v1833 = vmul.f32 %v1810, %v1832
  %v1834 = vsub.f32 1.0, %v1833
  %v1835 = vmul.f32 %v1832, %v1834
  %v1836 = vadd.f32 %v1832, %v1835
  %vm1837 = vweird.f32 %v1810
  %vm1838 = vweird.f32 %v1832
  %vm1839 = vmor %vm1837, %vm1838
  %v1840 = vsel %vm1839, %v1832, %v1836
  %v1841 = vand.u32 2147483647, %v1810
  %vm1842 = vcmp.eq.f32.partialorder %v1841, 8.507059e+37
  %v1843 = vand.u32 %v1810, 2147483648
  %v1844 = vor.u32 1.1754944e-38, %v1843
  %v1845 = vsel %vm1842, %v1844, %v1840
  %v1846 = vmul.f32 1.0, %v1845
  %v1847 = vrcp.pop %v1811
  %v1848 = vmul.f32 %v1811, %v1847
  %v1849 = vsub.f32 1.0, %v1848
  %v1850 = vmul.f32 %v1847, %v1849
  %v1851 = vadd.f32 %v1847, %v1850
  %vm1852 = vweird.f32 %v1811
  %vm1853 = vweird.f32 %v1847
  %vm1854 = vmor %vm1852, %vm1853
  %v1855 = vsel %vm1854, %v1847, %v1851
  %v1856 = vand.u32 2147483647, %v1811
  %vm1857 = vcmp.eq.f32.partialorder %v1856, 8.507059e+37
  %v1858 = vand.u32 %v1811, 2147483648
  %v1859 = vor.u32 1.1754944e-38, %v1858
  %v1860 = vsel %vm1857, %v1859, %v1855
  %v1861 = vmul.f32 1.0, %v1860
  %v1862 = vrcp.pop %v1812
  %v1863 = vmul.f32 %v1812, %v1862
  %v1864 = vsub.f32 1.0, %v1863
  %v1865 = vmul.f32 %v1862, %v1864
  %v1866 = vadd.f32 %v1862, %v1865
  %vm1867 = vweird.f32 %v1812
  %vm1868 = vweird.f32 %v1862
  %vm1869 = vmor %vm1867, %vm1868
  %v1870 = vsel %vm1869, %v1862, %v1866
  %v1871 = vand.u32 2147483647, %v1812
  %vm1872 = vcmp.eq.f32.partialorder %v1871, 8.507059e+37
  %v1873 = vand.u32 %v1812, 2147483648
  %v1874 = vor.u32 1.1754944e-38, %v1873
  %v1875 = vsel %vm1872, %v1874, %v1870
  %v1876 = vmul.f32 1.0, %v1875
  %v1877 = vrcp.pop %v1813
  %v1878 = vmul.f32 %v1813, %v1877
  %v1879 = vsub.f32 1.0, %v1878
  %v1880 = vmul.f32 %v1877, %v1879
  %v1881 = vadd.f32 %v1877, %v1880
  %vm1882 = vweird.f32 %v1813
  %vm1883 = vweird.f32 %v1877
  %vm1884 = vmor %vm1882, %vm1883
  %v1885 = vsel %vm1884, %v1877, %v1881
  %v1886 = vand.u32 2147483647, %v1813
  %vm1887 = vcmp.eq.f32.partialorder %v1886, 8.507059e+37
  %v1888 = vand.u32 %v1813, 2147483648
  %v1889 = vor.u32 1.1754944e-38, %v1888
  %v1890 = vsel %vm1887, %v1889, %v1885
  %v1891 = vmul.f32 1.0, %v1890
  %v1892 = vrcp.pop %v1814
  %v1893 = vmul.f32 %v1814, %v1892
  %v1894 = vsub.f32 1.0, %v1893
  %v1895 = vmul.f32 %v1892, %v1894
  %v1896 = vadd.f32 %v1892, %v1895
  %vm1897 = vweird.f32 %v1814
  %vm1898 = vweird.f32 %v1892
  %vm1899 = vmor %vm1897, %vm1898
  %v1900 = vsel %vm1899, %v1892, %v1896
  %v1901 = vand.u32 2147483647, %v1814
  %vm1902 = vcmp.eq.f32.partialorder %v1901, 8.507059e+37
  %v1903 = vand.u32 %v1814, 2147483648
  %v1904 = vor.u32 1.1754944e-38, %v1903
  %v1905 = vsel %vm1902, %v1904, %v1900
  %v1906 = vmul.f32 1.0, %v1905
  %v1907 = vrcp.pop %v1815
  %v1908 = vmul.f32 %v1815, %v1907
  %v1909 = vsub.f32 1.0, %v1908
  %v1910 = vmul.f32 %v1907, %v1909
  %v1911 = vadd.f32 %v1907, %v1910
  %vm1912 = vweird.f32 %v1815
  %vm1913 = vweird.f32 %v1907
  %vm1914 = vmor %vm1912, %vm1913
  %v1915 = vsel %vm1914, %v1907, %v1911
  %v1916 = vand.u32 2147483647, %v1815
  %vm1917 = vcmp.eq.f32.partialorder %v1916, 8.507059e+37
  %v1918 = vand.u32 %v1815, 2147483648
  %v1919 = vor.u32 1.1754944e-38, %v1918
  %v1920 = vsel %vm1917, %v1919, %v1915
  %v1921 = vmul.f32 1.0, %v1920
  %v1922 = vrcp.pop %v1816
  %v1923 = vmul.f32 %v1816, %v1922
  %v1924 = vsub.f32 1.0, %v1923
  %v1925 = vmul.f32 %v1922, %v1924
  %v1926 = vadd.f32 %v1922, %v1925
  %vm1927 = vweird.f32 %v1816
  %vm1928 = vweird.f32 %v1922
  %vm1929 = vmor %vm1927, %vm1928
  %v1930 = vsel %vm1929, %v1922, %v1926
  %v1931 = vand.u32 2147483647, %v1816
  %vm1932 = vcmp.eq.f32.partialorder %v1931, 8.507059e+37
  %v1933 = vand.u32 %v1816, 2147483648
  %v1934 = vor.u32 1.1754944e-38, %v1933
  %v1935 = vsel %vm1932, %v1934, %v1930
  %v1936 = vmul.f32 1.0, %v1935
  %1937 = vst.msk [vmem:[%s7] sm:$0xff] %vm67, %v1831
  %1938 = vst.msk [vmem:[%s7 + $0x8] sm:$0xff] %vm67, %v1846
  %1939 = vst.msk [vmem:[%s7 + $0x10] sm:$0xff] %vm67, %v1861
  %1940 = vst.msk [vmem:[%s7 + $0x18] sm:$0xff] %vm67, %v1876
  %1941 = vst.msk [vmem:[%s7 + $0x20] sm:$0xff] %vm67, %v1891
  %1942 = vst.msk [vmem:[%s7 + $0x28] sm:$0xff] %vm67, %v1906
  %1943 = vst.msk [vmem:[%s7 + $0x30] sm:$0xff] %vm67, %v1921
  %1944 = vst.msk [vmem:[%s7 + $0x38] sm:$0xff] %vm67, %v1936
  // Predicated region
  $region30: #{tg_supervisor_forward.1} parent=0 // pred_check
    _
  $region31: #{tg_supervisor_forward.1} parent=0 // pred_check_branch
    %1946 = sbr.rel (0) target = $region33
  $region32: #{tg_supervisor_forward.1} parent=0 // pred_region
    _
  $region33: #{tg_supervisor_forward.1} parent=0 // pred_fallthru
    _
  // Predicated region
  $region34: #{tg_supervisor_forward.1} parent=0 // pred_check
    _
  $region35: #{tg_supervisor_forward.1} parent=0 // pred_check_branch
    %1948 = sbr.rel (0) target = $region37
  $region36: #{tg_supervisor_forward.1} parent=0 // pred_region
    _
  $region37: #{tg_supervisor_forward.1} parent=0 // pred_fallthru
    _

</llo_original>
